<compile_context>
chip_gen: v5e
topology: v5e:2x2
jax: 0.10.0
libtpu: 0.0.40
codegen_flags: <defaults>
</compile_context>

<pallas_src>
import functools

import jax
import jax.numpy as jnp
from jax import lax
from jax.experimental import pallas as pl
from jax.experimental.pallas import tpu as pltpu

_BN_EPS = 1e-5
_LEAKY_SLOPE = 0.01


# ---------------------------------------------------------------------------
# Packed-parameter slab layout, shared by init_params and the kernel.
# All sections live in one (rows, 16) f32 slab; narrow sections are zero-padded
# on the lane axis and sliced with static ref indices inside the kernel.
# ---------------------------------------------------------------------------
def _param_layout(C, L, Kb):
    D = C * L
    D2, D4 = D // 2, D // 4
    mats = [
        ("fcb",     Kb,      D4),        # en_fc_B                (Kb, D/4)
        ("enc_c1",  6 * C,   4 * C),     # enc conv1, A|B block-diag
        ("enc_c2",  12 * C,  4 * C),     # enc conv2, A|B block-diag
        ("enc_lin", 4 * C,   2 * C),     # enc output linears, block-diag
        ("fuse",    2 * L,   C),         # fc_mu / fc_logvar wc weights, stacked
        ("dec_c1",  6 * C,   4 * C),     # dec conv1, A|B block-diag
        ("dec_c2",  12 * C,  4 * C),     # dec conv2, A|B block-diag
        ("dec_lin", 2 * D2,  D4 + Kb),   # dec output linears, block-diag
    ]
    vecs = [
        ("fcb_b", D4),
        ("e1_b", 4 * C), ("e1_g", 4 * C), ("e1_be", 4 * C),
        ("e2_b", 4 * C), ("e2_g", 4 * C), ("e2_be", 4 * C),
        ("enclin_b", 2 * C), ("fuse_b", 2),
        ("d1_b", 4 * C), ("d1_g", 4 * C), ("d1_be", 4 * C),
        ("d2_b", 4 * C), ("d2_g", 4 * C), ("d2_be", 4 * C),
        ("declin_b", D4 + Kb),
    ]
    layout, row, width = {}, 0, 1
    for name, nr, nc in mats:
        layout[name] = (row, nr, nc)
        row += nr
        width = max(width, nc)
    for name, nc in vecs:
        layout[name] = (row, 1, nc)
        row += 1
        width = max(width, nc)
    return layout, row, width


# ---------------------------------------------------------------------------
# In-kernel building blocks.  Conv activations are channels-last (B*L, C):
# length lives in sublanes (roll/shift target), channels live in lanes
# (matmul contraction target).  Both modality branches share the lanes.
# ---------------------------------------------------------------------------
def _length_masks(B, L):
    l = lax.broadcasted_iota(jnp.int32, (B * L, 1), 0) % L
    return (l == 0), (l == L - 1)


def _shift_prev(x, fill, masks):
    is_first, _ = masks
    return jnp.where(is_first, fill, pltpu.roll(x, 1, 0))


def _shift_next(x, fill, masks):
    _, is_last = masks
    return jnp.where(is_last, fill, pltpu.roll(x, x.shape[0] - 1, 0))


def _conv3(x, w_flat, b, masks):
    """Conv1d(k=3, s=1, p=1) as ONE im2col matmul (both branches lane-batched)."""
    xcat = jnp.concatenate(
        [_shift_prev(x, 0.0, masks), x, _shift_next(x, 0.0, masks)], axis=-1)
    return jnp.dot(xcat, w_flat, preferred_element_type=jnp.float32) + b


def _bn_lrelu_pool(y, gamma, beta, masks):
    """BatchNorm1d(train, biased var) -> LeakyReLU(0.01) -> MaxPool1d(3,1,1)."""
    mean = jnp.mean(y, axis=0, keepdims=True)
    var = jnp.mean(jnp.square(y - mean), axis=0, keepdims=True)
    y = (y - mean) * lax.rsqrt(var + _BN_EPS) * gamma + beta
    y = jnp.where(y > 0, y, _LEAKY_SLOPE * y)
    return jnp.maximum(jnp.maximum(_shift_prev(y, -jnp.inf, masks), y),
                       _shift_next(y, -jnp.inf, masks))


def _conv_block(x, w1, b1, g1, be1, w2, b2, g2, be2, masks):
    y = _bn_lrelu_pool(_conv3(x, w1, b1, masks), g1, be1, masks)
    return _bn_lrelu_pool(_conv3(y, w2, b2, masks), g2, be2, masks)


# ---------------------------------------------------------------------------
# The single fused kernel: encode (both modalities) -> fusion mu/logvar ->
# reparameterize -> decode (both modalities) -> both output linears.
# ---------------------------------------------------------------------------
def _joint_vae_kernel(x_a_ref, x_b_ref, eps_ref, slab_ref,
                      mu_ref, lv_ref, z_ref, xa_ref, xb_ref,
                      *, B, C, L, Kb):
    D = C * L
    D2, D4 = D // 2, D // 4
    BL = B * L
    layout, _, _ = _param_layout(C, L, Kb)
    masks = _length_masks(B, L)

    def p(name):
        r0, nr, nc = layout[name]
        return slab_ref[r0:r0 + nr, 0:nc]

    # ---- encoder front ends ------------------------------------------------
    # torch x_A.view(B, C, L) -> channels-last rows.
    xa_cl = jnp.transpose(x_a_ref[...], (0, 2, 1)).reshape(BL, C)
    # torch x_B.view(B, 4, IB/4) -> en_fc_B -> .view(B, C, L) (C == 4).
    xb_lin = jnp.dot(x_b_ref[...], p("fcb"),
                     preferred_element_type=jnp.float32) + p("fcb_b")
    xb_cl = jnp.transpose(xb_lin.reshape(B, C, L), (0, 2, 1)).reshape(BL, C)

    # ---- both encoder conv blocks as one lane-batched block-diag pass ------
    x_enc = jnp.concatenate([xa_cl, xb_cl], axis=-1)                 # (BL, 2C)
    enc = _conv_block(x_enc,
                      p("enc_c1"), p("e1_b"), p("e1_g"), p("e1_be"),
                      p("enc_c2"), p("e2_b"), p("e2_g"), p("e2_be"),
                      masks)                                          # (BL, 4C)

    # Both encoder output linears as one block-diagonal matmul.
    h_ab = jnp.dot(enc, p("enc_lin"),
                   preferred_element_type=jnp.float32) + p("enclin_b")  # (BL, 2C)
    h3 = h_ab.reshape(B, L, 2 * C)
    h_a, h_b = h3[..., :C], h3[..., C:]                               # (B, L, C)

    # ---- FusionLayer mu / logvar + reparameterize ---------------------------
    w_fuse = p("fuse")                 # (2L, C): rows [0:L]=mu wc, [L:2L]=logvar wc
    b_fuse = p("fuse_b")               # (1, 2)

    def fuse(w, b):                    # w: (L, C), b: (1, 1)
        def score(h):                  # VPU multiply + XLU reductions
            s = jnp.sum(h * w, axis=-1, keepdims=True)                # (B, L, 1)
            return jnp.sum(s, axis=1, keepdims=True) + b              # (B, 1, 1)
        s_a, s_b = score(h_a), score(h_b)
        m = jnp.maximum(s_a, s_b)
        e_a, e_b = jnp.exp(s_a - m), jnp.exp(s_b - m)
        inv = pl.reciprocal(e_a + e_b, approx=True)
        return jnp.tanh((e_a * h_a + e_b * h_b) * inv)

    mu = fuse(w_fuse[0:L, :], b_fuse[:, 0:1])
    lv = fuse(w_fuse[L:2 * L, :], b_fuse[:, 1:2])
    z = mu + eps_ref[...] * jnp.exp(0.5 * lv)                          # (B, L, C)

    mu_ref[...] = mu
    lv_ref[...] = lv
    z_ref[...] = z

    # ---- torch z.view(B, C, L): l-major -> channel-major, done in-kernel -----
    # Built from static slices + lane concats + one minor transpose only.
    r = L // C
    chunks = []
    for c2 in range(C):
        chunks.append(jnp.concatenate(
            [z[:, c2 * r + j:c2 * r + j + 1, :] for j in range(r)], axis=-1))
    z_cm = jnp.concatenate(chunks, axis=1)                             # (B, C, L)
    z_dec = jnp.transpose(z_cm, (0, 2, 1)).reshape(BL, C)              # channels-last

    # ---- both decoder conv blocks, lane-batched (shared z) -------------------
    x_dec = jnp.concatenate([z_dec, z_dec], axis=-1)                   # (BL, 2C)
    dec = _conv_block(x_dec,
                      p("dec_c1"), p("d1_b"), p("d1_g"), p("d1_be"),
                      p("dec_c2"), p("d2_b"), p("d2_g"), p("d2_be"),
                      masks)                                           # (BL, 4C)

    # ---- torch .view(B, 4, D/2) per branch + both output linears -------------
    dec_t = jnp.transpose(dec.reshape(B, L, 4 * C), (0, 2, 1))         # (B, 4C, L)
    half = C // 2                                                      # channels / view-row
    rows_a, rows_b = [], []
    for rr in range(4):
        rows_a.append(jnp.concatenate(
            [dec_t[:, rr * half + u:rr * half + u + 1, :] for u in range(half)],
            axis=-1))                                                  # (B, 1, D2)
        rows_b.append(jnp.concatenate(
            [dec_t[:, 2 * C + rr * half + u:2 * C + rr * half + u + 1, :]
             for u in range(half)], axis=-1))
    rows = jnp.concatenate([jnp.concatenate(rows_a, axis=1),
                            jnp.concatenate(rows_b, axis=1)], axis=-1)  # (B, 4, 2*D2)
    out = jnp.dot(rows.reshape(4 * B, 2 * D2), p("dec_lin"),
                  preferred_element_type=jnp.float32) + p("declin_b")   # (4B, D4+Kb)
    xa_ref[...] = out[:, :D4]
    xb_ref[...] = out[:, D4:]


# ---------------------------------------------------------------------------
# Deterministic synthetic parameters, emitted directly as the packed slab.
# ---------------------------------------------------------------------------
def init_params(key, input_size_A, input_size_B, input_size, seq_len):
    C, L = input_size, seq_len
    D = C * L
    D2, D4, Kb = D // 2, D // 4, input_size_B // 4
    assert input_size_A == D and C == 4 and L % C == 0
    keys = iter(jax.random.split(key, 64))

    def uniform(shape, bound):
        return jax.random.uniform(next(keys), shape, jnp.float32, -bound, bound)

    def lin(fan_in, fan_out):
        bound = 1.0 / (fan_in ** 0.5)
        return uniform((fan_in, fan_out), bound), uniform((fan_out,), bound)

    def conv_taps(cin, cout, transposed):
        # Returns taps-major weight (3, cin, cout) for the in-kernel im2col
        # layout (row = tap*cin + cin_index).  ConvTranspose1d(k=3,s=1,p=1) is
        # converted to an equivalent conv with flipped taps.
        bound = 1.0 / ((cin * 3) ** 0.5)
        if transposed:
            w = uniform((cin, cout, 3), bound)
            w = jnp.transpose(jnp.flip(w, axis=2), (2, 0, 1))
        else:
            w = uniform((cout, cin, 3), bound)
            w = jnp.transpose(w, (2, 1, 0))
        return w, uniform((cout,), bound)

    def combine_conv(wa, wb):
        # Two (3, cin, cout) taps -> lane-batched block-diagonal (3*2cin, 2cout).
        k, cin, cout = wa.shape
        zero = jnp.zeros_like(wa)
        top = jnp.concatenate([wa, zero], axis=-1)
        bot = jnp.concatenate([zero, wb], axis=-1)
        return jnp.concatenate([top, bot], axis=1).reshape(k * 2 * cin, 2 * cout)

    def block_diag(wa, wb):
        ra, ca = wa.shape
        rb, cb = wb.shape
        top = jnp.concatenate([wa, jnp.zeros((ra, cb), jnp.float32)], axis=1)
        bot = jnp.concatenate([jnp.zeros((rb, ca), jnp.float32), wb], axis=1)
        return jnp.concatenate([top, bot], axis=0)

    # Raw per-module parameters (torch-equivalent shapes).
    fcb_w, fcb_b = lin(Kb, D4)
    ea1_w, ea1_b = conv_taps(C, 2 * C, False)
    ea2_w, ea2_b = conv_taps(2 * C, 2 * C, False)
    eb1_w, eb1_b = conv_taps(C, 2 * C, False)
    eb2_w, eb2_b = conv_taps(2 * C, 2 * C, False)
    ela_w, ela_b = lin(2 * C, C)
    elb_w, elb_b = lin(2 * C, C)
    mu_w, mu_b = lin(D, 1)        # FusionLayer wc
    lv_w, lv_b = lin(D, 1)
    da1_w, da1_b = conv_taps(C, 2 * C, True)
    da2_w, da2_b = conv_taps(2 * C, 2 * C, True)
    db1_w, db1_b = conv_taps(C, 2 * C, True)
    db2_w, db2_b = conv_taps(2 * C, 2 * C, True)
    dla_w, dla_b = lin(D2, D4)
    dlb_w, dlb_b = lin(D2, Kb)

    layout, nrows, width = _param_layout(C, L, Kb)
    slab = jnp.zeros((nrows, width), jnp.float32)

    def put(s, name, w):
        r0, nr, nc = layout[name]
        w = jnp.asarray(w, jnp.float32).reshape(nr, nc)
        return s.at[r0:r0 + nr, 0:nc].set(w)

    ones = jnp.ones((4 * C,), jnp.float32)     # BN gamma, torch default
    zeros = jnp.zeros((4 * C,), jnp.float32)   # BN beta, torch default

    slab = put(slab, "fcb", fcb_w)
    slab = put(slab, "enc_c1", combine_conv(ea1_w, eb1_w))
    slab = put(slab, "enc_c2", combine_conv(ea2_w, eb2_w))
    slab = put(slab, "enc_lin", block_diag(ela_w, elb_w))
    # wc weight (D -> 1) re-laid out to the l-major (L, C) layout of h.
    slab = put(slab, "fuse",
               jnp.concatenate([mu_w.reshape(L, C), lv_w.reshape(L, C)], axis=0))
    slab = put(slab, "dec_c1", combine_conv(da1_w, db1_w))
    slab = put(slab, "dec_c2", combine_conv(da2_w, db2_w))
    slab = put(slab, "dec_lin", block_diag(dla_w, dlb_w))

    slab = put(slab, "fcb_b", fcb_b)
    slab = put(slab, "e1_b", jnp.concatenate([ea1_b, eb1_b]))
    slab = put(slab, "e1_g", ones)
    slab = put(slab, "e1_be", zeros)
    slab = put(slab, "e2_b", jnp.concatenate([ea2_b, eb2_b]))
    slab = put(slab, "e2_g", ones)
    slab = put(slab, "e2_be", zeros)
    slab = put(slab, "enclin_b", jnp.concatenate([ela_b, elb_b]))
    slab = put(slab, "fuse_b", jnp.concatenate([mu_b, lv_b]))
    slab = put(slab, "d1_b", jnp.concatenate([da1_b, db1_b]))
    slab = put(slab, "d1_g", ones)
    slab = put(slab, "d1_be", zeros)
    slab = put(slab, "d2_b", jnp.concatenate([da2_b, db2_b]))
    slab = put(slab, "d2_g", ones)
    slab = put(slab, "d2_be", zeros)
    slab = put(slab, "declin_b", jnp.concatenate([dla_b, dlb_b]))
    return {"slab": slab}


# ---------------------------------------------------------------------------
# Forward pass: exactly one pallas_call; wrapper does only free bitcast reshapes.
# ---------------------------------------------------------------------------
def joint_vae_forward(params, x_A, x_B, eps, *, input_size, seq_len, input_size_B):
    B = x_A.shape[0]
    C, L = input_size, seq_len
    D = C * L
    D4, Kb = D // 4, input_size_B // 4
    # Layout tricks in the kernel assume the torch .view relationships:
    assert C == 4 and L % C == 0 and input_size_B % 4 == 0

    # Contiguity-preserving reshapes only (no data movement).
    x_a3 = x_A.reshape(B, C, L)
    x_b_rows = x_B.reshape(B * 4, Kb)
    eps3 = eps.reshape(B, L, C)

    vmem = pltpu.MemorySpace.VMEM
    out_shapes = (
        jax.ShapeDtypeStruct((B, L, C), jnp.float32),      # mu (l-major)
        jax.ShapeDtypeStruct((B, L, C), jnp.float32),      # logvar (l-major)
        jax.ShapeDtypeStruct((B, L, C), jnp.float32),      # z (l-major)
        jax.ShapeDtypeStruct((B * 4, D4), jnp.float32),    # x_A reconstruction rows
        jax.ShapeDtypeStruct((B * 4, Kb), jnp.float32),    # x_B reconstruction rows
    )
    mu3, lv3, z3, xa_rows, xb_rows = pl.pallas_call(
        functools.partial(_joint_vae_kernel, B=B, C=C, L=L, Kb=Kb),
        out_shape=out_shapes,
        in_specs=[pl.BlockSpec(memory_space=vmem) for _ in range(4)],
        out_specs=tuple(pl.BlockSpec(memory_space=vmem) for _ in range(5)),
    )(x_a3, x_b_rows, eps3, params["slab"])

    mu = mu3.reshape(B, D)
    logvar = lv3.reshape(B, D)
    z = z3.reshape(B, D)
    x_A_rec = xa_rows.reshape(B, D)
    x_B_rec = xb_rows.reshape(B, input_size_B)
    return z, x_A_rec, x_B_rec, mu, logvar


if __name__ == "__main__":
    input_size, seq_len = 4, 8
    input_size_A = input_size * seq_len          # 32
    input_size_B = 16
    Bsz = 2

    key = jax.random.PRNGKey(0)
    kp, ka, kb, ke = jax.random.split(key, 4)
    params = init_params(kp, input_size_A, input_size_B, input_size, seq_len)
    x_A = jax.random.normal(ka, (Bsz, input_size_A), jnp.float32)
    x_B = jax.random.normal(kb, (Bsz, input_size_B), jnp.float32)
    eps = jax.random.normal(ke, (Bsz, input_size * seq_len), jnp.float32)

    fwd = jax.jit(functools.partial(joint_vae_forward, input_size=input_size,
                                    seq_len=seq_len, input_size_B=input_size_B))
    z, xA_rec, xB_rec, mu, logvar = fwd(params, x_A, x_B, eps)
    jax.block_until_ready((z, xA_rec, xB_rec, mu, logvar))

    D = input_size * seq_len
    assert z.shape == (Bsz, D)
    assert mu.shape == (Bsz, D)
    assert logvar.shape == (Bsz, D)
    assert xA_rec.shape == (Bsz, D)
    assert xB_rec.shape == (Bsz, input_size_B)
    for name, arr in (("z", z), ("xA_rec", xA_rec), ("xB_rec", xB_rec),
                      ("mu", mu), ("logvar", logvar)):
        assert bool(jnp.all(jnp.isfinite(arr))), f"non-finite values in {name}"
    print("KERNEL_OK")
</pallas_src>

<mosaic_0001>
module attributes {stable_mosaic.version = 11 : i64} {
  func.func @_joint_vae_kernel(%arg0: memref<2x4x8xf32, #tpu.memory_space<vmem>>, %arg1: memref<8x4xf32, #tpu.memory_space<vmem>>, %arg2: memref<2x8x4xf32, #tpu.memory_space<vmem>>, %arg3: memref<228x16xf32, #tpu.memory_space<vmem>>, %arg4: memref<2x8x4xf32, #tpu.memory_space<vmem>>, %arg5: memref<2x8x4xf32, #tpu.memory_space<vmem>>, %arg6: memref<2x8x4xf32, #tpu.memory_space<vmem>>, %arg7: memref<8x8xf32, #tpu.memory_space<vmem>>, %arg8: memref<8x4xf32, #tpu.memory_space<vmem>>) attributes {dimension_semantics = [], scalar_prefetch = 0 : i64, scratch_operands = 0 : i64, tpu.core_type = #tpu.core_type<tc>} {
    %0 = tpu.iota {dimensions = array<i32: 0>} : vector<16x1xi32>
    %c8_i32 = arith.constant 8 : i32
    %c0_i32 = arith.constant 0 : i32
    %1 = arith.cmpi eq, %c8_i32, %c0_i32 : i32
    %c1_i32 = arith.constant 1 : i32
    %2 = arith.select %1, %c1_i32, %c8_i32 : i32
    %3 = vector.broadcast %2 : i32 to vector<16x1xi32>
    %4 = arith.remsi %0, %3 : vector<16x1xi32>
    %c0_i32_0 = arith.constant 0 : i32
    %5 = vector.broadcast %c0_i32_0 : i32 to vector<16x1xi32>
    %6 = arith.cmpi ne, %4, %5 : vector<16x1xi32>
    %c0_i32_1 = arith.constant 0 : i32
    %7 = vector.broadcast %c0_i32_1 : i32 to vector<16x1xi32>
    %8 = arith.cmpi slt, %4, %7 : vector<16x1xi32>
    %c0_i32_2 = arith.constant 0 : i32
    %9 = arith.cmpi slt, %2, %c0_i32_2 : i32
    %10 = vector.broadcast %9 : i1 to vector<16x1xi1>
    %11 = vector.broadcast %10 : vector<16x1xi1> to vector<16x1xi1>
    %12 = arith.xori %8, %11 : vector<16x1xi1>
    %13 = arith.andi %12, %6 : vector<16x1xi1>
    %14 = vector.broadcast %2 : i32 to vector<16x1xi32>
    %15 = arith.addi %4, %14 : vector<16x1xi32>
    %16 = arith.select %13, %15, %4 : vector<16x1xi1>, vector<16x1xi32>
    %c0_i32_3 = arith.constant 0 : i32
    %17 = vector.broadcast %c0_i32_3 : i32 to vector<16x1xi32>
    %18 = arith.cmpi eq, %16, %17 : vector<16x1xi32>
    %c7_i32 = arith.constant 7 : i32
    %19 = vector.broadcast %c7_i32 : i32 to vector<16x1xi32>
    %20 = arith.cmpi eq, %16, %19 : vector<16x1xi32>
    %c0 = arith.constant 0 : index
    %c0_4 = arith.constant 0 : index
    %c0_5 = arith.constant 0 : index
    %21 = vector.load %arg0[%c0, %c0_4, %c0_5] : memref<2x4x8xf32, #tpu.memory_space<vmem>>, vector<2x4x8xf32>
    %22 = tpu.transpose %21, [0, 2, 1] : vector<2x4x8xf32> -> vector<2x8x4xf32>
    %23 = vector.shape_cast %22 : vector<2x8x4xf32> to vector<16x4xf32>
    %c0_6 = arith.constant 0 : index
    %c0_7 = arith.constant 0 : index
    %24 = vector.load %arg1[%c0_6, %c0_7] : memref<8x4xf32, #tpu.memory_space<vmem>>, vector<8x4xf32>
    %c0_8 = arith.constant 0 : index
    %c0_9 = arith.constant 0 : index
    %25 = vector.load %arg3[%c0_8, %c0_9] : memref<228x16xf32, #tpu.memory_space<vmem>>, vector<4x8xf32>
    %cst = arith.constant dense<0.000000e+00> : vector<8x8xf32>
    %26 = tpu.matmul %24, %25, %cst {dimension_numbers = #tpu.dot_dimension_numbers<[1], [0], [0], [1], [0, 0, 1, 1], [], []>} : vector<8x4xf32>, vector<4x8xf32>, vector<8x8xf32> -> vector<8x8xf32>
    %c212 = arith.constant 212 : index
    %c0_10 = arith.constant 0 : index
    %27 = vector.load %arg3[%c212, %c0_10] : memref<228x16xf32, #tpu.memory_space<vmem>>, vector<1x8xf32>
    %28 = vector.broadcast %27 : vector<1x8xf32> to vector<8x8xf32>
    %29 = arith.addf %26, %28 : vector<8x8xf32>
    %30 = vector.shape_cast %29 : vector<8x8xf32> to vector<2x4x8xf32>
    %31 = tpu.transpose %30, [0, 2, 1] : vector<2x4x8xf32> -> vector<2x8x4xf32>
    %32 = vector.shape_cast %31 : vector<2x8x4xf32> to vector<16x4xf32>
    %33 = tpu.concatenate %23, %32 in 1 : vector<16x4xf32>, vector<16x4xf32> -> vector<16x8xf32>
    %c4 = arith.constant 4 : index
    %c0_11 = arith.constant 0 : index
    %34 = vector.load %arg3[%c4, %c0_11] : memref<228x16xf32, #tpu.memory_space<vmem>>, vector<24x16xf32>
    %c213 = arith.constant 213 : index
    %c0_12 = arith.constant 0 : index
    %35 = vector.load %arg3[%c213, %c0_12] : memref<228x16xf32, #tpu.memory_space<vmem>>, vector<1x16xf32>
    %c214 = arith.constant 214 : index
    %c0_13 = arith.constant 0 : index
    %36 = vector.load %arg3[%c214, %c0_13] : memref<228x16xf32, #tpu.memory_space<vmem>>, vector<1x16xf32>
    %c215 = arith.constant 215 : index
    %c0_14 = arith.constant 0 : index
    %37 = vector.load %arg3[%c215, %c0_14] : memref<228x16xf32, #tpu.memory_space<vmem>>, vector<1x16xf32>
    %c28 = arith.constant 28 : index
    %c0_15 = arith.constant 0 : index
    %38 = vector.load %arg3[%c28, %c0_15] : memref<228x16xf32, #tpu.memory_space<vmem>>, vector<48x16xf32>
    %c216 = arith.constant 216 : index
    %c0_16 = arith.constant 0 : index
    %39 = vector.load %arg3[%c216, %c0_16] : memref<228x16xf32, #tpu.memory_space<vmem>>, vector<1x16xf32>
    %c217 = arith.constant 217 : index
    %c0_17 = arith.constant 0 : index
    %40 = vector.load %arg3[%c217, %c0_17] : memref<228x16xf32, #tpu.memory_space<vmem>>, vector<1x16xf32>
    %c218 = arith.constant 218 : index
    %c0_18 = arith.constant 0 : index
    %41 = vector.load %arg3[%c218, %c0_18] : memref<228x16xf32, #tpu.memory_space<vmem>>, vector<1x16xf32>
    %c1_i32_19 = arith.constant 1 : i32
    %42 = tpu.dynamic_rotate %33 by %c1_i32_19 dim 0 : vector<16x8xf32>, i32 -> vector<16x8xf32>
    %cst_20 = arith.constant 0.000000e+00 : f32
    %43 = vector.shape_cast %18 : vector<16x1xi1> to vector<16x1xi1>
    %44 = vector.broadcast %43 : vector<16x1xi1> to vector<16x8xi1>
    %45 = vector.broadcast %cst_20 : f32 to vector<16x8xf32>
    %46 = arith.select %44, %45, %42 : vector<16x8xi1>, vector<16x8xf32>
    %c15_i32 = arith.constant 15 : i32
    %47 = tpu.dynamic_rotate %33 by %c15_i32 dim 0 : vector<16x8xf32>, i32 -> vector<16x8xf32>
    %cst_21 = arith.constant 0.000000e+00 : f32
    %48 = vector.shape_cast %20 : vector<16x1xi1> to vector<16x1xi1>
    %49 = vector.broadcast %48 : vector<16x1xi1> to vector<16x8xi1>
    %50 = vector.broadcast %cst_21 : f32 to vector<16x8xf32>
    %51 = arith.select %49, %50, %47 : vector<16x8xi1>, vector<16x8xf32>
    %52 = tpu.concatenate %46, %33, %51 in 1 : vector<16x8xf32>, vector<16x8xf32>, vector<16x8xf32> -> vector<16x24xf32>
    %cst_22 = arith.constant dense<0.000000e+00> : vector<16x16xf32>
    %53 = tpu.matmul %52, %34, %cst_22 {dimension_numbers = #tpu.dot_dimension_numbers<[1], [0], [0], [1], [0, 0, 1, 1], [], []>} : vector<16x24xf32>, vector<24x16xf32>, vector<16x16xf32> -> vector<16x16xf32>
    %54 = vector.broadcast %35 : vector<1x16xf32> to vector<16x16xf32>
    %55 = arith.addf %53, %54 : vector<16x16xf32>
    %cst_23 = arith.constant dense<0.000000e+00> : vector<16xf32>
    %56 = vector.multi_reduction <add>, %55, %cst_23 [0] : vector<16x16xf32> to vector<16xf32>
    %57 = vector.shape_cast %56 : vector<16xf32> to vector<1x16xf32>
    %cst_24 = arith.constant 1.600000e+01 : f32
    %58 = vector.broadcast %cst_24 : f32 to vector<1x16xf32>
    %59 = arith.divf %57, %58 : vector<1x16xf32>
    %60 = vector.broadcast %59 : vector<1x16xf32> to vector<16x16xf32>
    %61 = arith.subf %55, %60 : vector<16x16xf32>
    %62 = arith.mulf %61, %61 : vector<16x16xf32>
    %cst_25 = arith.constant dense<0.000000e+00> : vector<16xf32>
    %63 = vector.multi_reduction <add>, %62, %cst_25 [0] : vector<16x16xf32> to vector<16xf32>
    %64 = vector.shape_cast %63 : vector<16xf32> to vector<1x16xf32>
    %cst_26 = arith.constant 1.600000e+01 : f32
    %65 = vector.broadcast %cst_26 : f32 to vector<1x16xf32>
    %66 = arith.divf %64, %65 : vector<1x16xf32>
    %67 = vector.broadcast %59 : vector<1x16xf32> to vector<16x16xf32>
    %68 = arith.subf %55, %67 : vector<16x16xf32>
    %cst_27 = arith.constant 9.99999974E-6 : f32
    %69 = vector.broadcast %cst_27 : f32 to vector<1x16xf32>
    %70 = arith.addf %66, %69 : vector<1x16xf32>
    %71 = math.rsqrt %70 : vector<1x16xf32>
    %72 = vector.broadcast %71 : vector<1x16xf32> to vector<16x16xf32>
    %73 = arith.mulf %68, %72 : vector<16x16xf32>
    %74 = vector.broadcast %36 : vector<1x16xf32> to vector<16x16xf32>
    %75 = arith.mulf %73, %74 : vector<16x16xf32>
    %76 = vector.broadcast %37 : vector<1x16xf32> to vector<16x16xf32>
    %77 = arith.addf %75, %76 : vector<16x16xf32>
    %cst_28 = arith.constant 0.000000e+00 : f32
    %78 = vector.broadcast %cst_28 : f32 to vector<16x16xf32>
    %79 = arith.cmpf ogt, %77, %78 : vector<16x16xf32>
    %cst_29 = arith.constant 0.00999999977 : f32
    %80 = vector.broadcast %cst_29 : f32 to vector<16x16xf32>
    %81 = arith.mulf %80, %77 : vector<16x16xf32>
    %82 = arith.select %79, %77, %81 : vector<16x16xi1>, vector<16x16xf32>
    %c1_i32_30 = arith.constant 1 : i32
    %83 = tpu.dynamic_rotate %82 by %c1_i32_30 dim 0 : vector<16x16xf32>, i32 -> vector<16x16xf32>
    %cst_31 = arith.constant 0xFF800000 : f32
    %84 = vector.shape_cast %18 : vector<16x1xi1> to vector<16x1xi1>
    %85 = vector.broadcast %84 : vector<16x1xi1> to vector<16x16xi1>
    %86 = vector.broadcast %cst_31 : f32 to vector<16x16xf32>
    %87 = arith.select %85, %86, %83 : vector<16x16xi1>, vector<16x16xf32>
    %88 = arith.maximumf %87, %82 : vector<16x16xf32>
    %c15_i32_32 = arith.constant 15 : i32
    %89 = tpu.dynamic_rotate %82 by %c15_i32_32 dim 0 : vector<16x16xf32>, i32 -> vector<16x16xf32>
    %cst_33 = arith.constant 0xFF800000 : f32
    %90 = vector.shape_cast %20 : vector<16x1xi1> to vector<16x1xi1>
    %91 = vector.broadcast %90 : vector<16x1xi1> to vector<16x16xi1>
    %92 = vector.broadcast %cst_33 : f32 to vector<16x16xf32>
    %93 = arith.select %91, %92, %89 : vector<16x16xi1>, vector<16x16xf32>
    %94 = arith.maximumf %88, %93 : vector<16x16xf32>
    %c1_i32_34 = arith.constant 1 : i32
    %95 = tpu.dynamic_rotate %94 by %c1_i32_34 dim 0 : vector<16x16xf32>, i32 -> vector<16x16xf32>
    %cst_35 = arith.constant 0.000000e+00 : f32
    %96 = vector.shape_cast %18 : vector<16x1xi1> to vector<16x1xi1>
    %97 = vector.broadcast %96 : vector<16x1xi1> to vector<16x16xi1>
    %98 = vector.broadcast %cst_35 : f32 to vector<16x16xf32>
    %99 = arith.select %97, %98, %95 : vector<16x16xi1>, vector<16x16xf32>
    %c15_i32_36 = arith.constant 15 : i32
    %100 = tpu.dynamic_rotate %94 by %c15_i32_36 dim 0 : vector<16x16xf32>, i32 -> vector<16x16xf32>
    %cst_37 = arith.constant 0.000000e+00 : f32
    %101 = vector.shape_cast %20 : vector<16x1xi1> to vector<16x1xi1>
    %102 = vector.broadcast %101 : vector<16x1xi1> to vector<16x16xi1>
    %103 = vector.broadcast %cst_37 : f32 to vector<16x16xf32>
    %104 = arith.select %102, %103, %100 : vector<16x16xi1>, vector<16x16xf32>
    %105 = tpu.concatenate %99, %94, %104 in 1 : vector<16x16xf32>, vector<16x16xf32>, vector<16x16xf32> -> vector<16x48xf32>
    %cst_38 = arith.constant dense<0.000000e+00> : vector<16x16xf32>
    %106 = tpu.matmul %105, %38, %cst_38 {dimension_numbers = #tpu.dot_dimension_numbers<[1], [0], [0], [1], [0, 0, 1, 1], [], []>} : vector<16x48xf32>, vector<48x16xf32>, vector<16x16xf32> -> vector<16x16xf32>
    %107 = vector.broadcast %39 : vector<1x16xf32> to vector<16x16xf32>
    %108 = arith.addf %106, %107 : vector<16x16xf32>
    %cst_39 = arith.constant dense<0.000000e+00> : vector<16xf32>
    %109 = vector.multi_reduction <add>, %108, %cst_39 [0] : vector<16x16xf32> to vector<16xf32>
    %110 = vector.shape_cast %109 : vector<16xf32> to vector<1x16xf32>
    %cst_40 = arith.constant 1.600000e+01 : f32
    %111 = vector.broadcast %cst_40 : f32 to vector<1x16xf32>
    %112 = arith.divf %110, %111 : vector<1x16xf32>
    %113 = vector.broadcast %112 : vector<1x16xf32> to vector<16x16xf32>
    %114 = arith.subf %108, %113 : vector<16x16xf32>
    %115 = arith.mulf %114, %114 : vector<16x16xf32>
    %cst_41 = arith.constant dense<0.000000e+00> : vector<16xf32>
    %116 = vector.multi_reduction <add>, %115, %cst_41 [0] : vector<16x16xf32> to vector<16xf32>
    %117 = vector.shape_cast %116 : vector<16xf32> to vector<1x16xf32>
    %cst_42 = arith.constant 1.600000e+01 : f32
    %118 = vector.broadcast %cst_42 : f32 to vector<1x16xf32>
    %119 = arith.divf %117, %118 : vector<1x16xf32>
    %120 = vector.broadcast %112 : vector<1x16xf32> to vector<16x16xf32>
    %121 = arith.subf %108, %120 : vector<16x16xf32>
    %cst_43 = arith.constant 9.99999974E-6 : f32
    %122 = vector.broadcast %cst_43 : f32 to vector<1x16xf32>
    %123 = arith.addf %119, %122 : vector<1x16xf32>
    %124 = math.rsqrt %123 : vector<1x16xf32>
    %125 = vector.broadcast %124 : vector<1x16xf32> to vector<16x16xf32>
    %126 = arith.mulf %121, %125 : vector<16x16xf32>
    %127 = vector.broadcast %40 : vector<1x16xf32> to vector<16x16xf32>
    %128 = arith.mulf %126, %127 : vector<16x16xf32>
    %129 = vector.broadcast %41 : vector<1x16xf32> to vector<16x16xf32>
    %130 = arith.addf %128, %129 : vector<16x16xf32>
    %cst_44 = arith.constant 0.000000e+00 : f32
    %131 = vector.broadcast %cst_44 : f32 to vector<16x16xf32>
    %132 = arith.cmpf ogt, %130, %131 : vector<16x16xf32>
    %cst_45 = arith.constant 0.00999999977 : f32
    %133 = vector.broadcast %cst_45 : f32 to vector<16x16xf32>
    %134 = arith.mulf %133, %130 : vector<16x16xf32>
    %135 = arith.select %132, %130, %134 : vector<16x16xi1>, vector<16x16xf32>
    %c1_i32_46 = arith.constant 1 : i32
    %136 = tpu.dynamic_rotate %135 by %c1_i32_46 dim 0 : vector<16x16xf32>, i32 -> vector<16x16xf32>
    %cst_47 = arith.constant 0xFF800000 : f32
    %137 = vector.shape_cast %18 : vector<16x1xi1> to vector<16x1xi1>
    %138 = vector.broadcast %137 : vector<16x1xi1> to vector<16x16xi1>
    %139 = vector.broadcast %cst_47 : f32 to vector<16x16xf32>
    %140 = arith.select %138, %139, %136 : vector<16x16xi1>, vector<16x16xf32>
    %141 = arith.maximumf %140, %135 : vector<16x16xf32>
    %c15_i32_48 = arith.constant 15 : i32
    %142 = tpu.dynamic_rotate %135 by %c15_i32_48 dim 0 : vector<16x16xf32>, i32 -> vector<16x16xf32>
    %cst_49 = arith.constant 0xFF800000 : f32
    %143 = vector.shape_cast %20 : vector<16x1xi1> to vector<16x1xi1>
    %144 = vector.broadcast %143 : vector<16x1xi1> to vector<16x16xi1>
    %145 = vector.broadcast %cst_49 : f32 to vector<16x16xf32>
    %146 = arith.select %144, %145, %142 : vector<16x16xi1>, vector<16x16xf32>
    %147 = arith.maximumf %141, %146 : vector<16x16xf32>
    %c76 = arith.constant 76 : index
    %c0_50 = arith.constant 0 : index
    %148 = vector.load %arg3[%c76, %c0_50] : memref<228x16xf32, #tpu.memory_space<vmem>>, vector<16x8xf32>
    %cst_51 = arith.constant dense<0.000000e+00> : vector<16x8xf32>
    %149 = tpu.matmul %147, %148, %cst_51 {dimension_numbers = #tpu.dot_dimension_numbers<[1], [0], [0], [1], [0, 0, 1, 1], [], []>} : vector<16x16xf32>, vector<16x8xf32>, vector<16x8xf32> -> vector<16x8xf32>
    %c219 = arith.constant 219 : index
    %c0_52 = arith.constant 0 : index
    %150 = vector.load %arg3[%c219, %c0_52] : memref<228x16xf32, #tpu.memory_space<vmem>>, vector<1x8xf32>
    %151 = vector.broadcast %150 : vector<1x8xf32> to vector<16x8xf32>
    %152 = arith.addf %149, %151 : vector<16x8xf32>
    %153 = vector.shape_cast %152 : vector<16x8xf32> to vector<2x8x8xf32>
    %154 = vector.extract_strided_slice %153 {offsets = [0, 0, 0], sizes = [2, 8, 4], strides = [1, 1, 1]} : vector<2x8x8xf32> to vector<2x8x4xf32>
    %155 = vector.extract_strided_slice %153 {offsets = [0, 0, 4], sizes = [2, 8, 4], strides = [1, 1, 1]} : vector<2x8x8xf32> to vector<2x8x4xf32>
    %c92 = arith.constant 92 : index
    %c0_53 = arith.constant 0 : index
    %156 = vector.load %arg3[%c92, %c0_53] : memref<228x16xf32, #tpu.memory_space<vmem>>, vector<16x4xf32>
    %c220 = arith.constant 220 : index
    %c0_54 = arith.constant 0 : index
    %157 = vector.load %arg3[%c220, %c0_54] : memref<228x16xf32, #tpu.memory_space<vmem>>, vector<1x2xf32>
    %158 = vector.extract_strided_slice %156 {offsets = [0, 0], sizes = [8, 4], strides = [1, 1]} : vector<16x4xf32> to vector<8x4xf32>
    %159 = vector.extract_strided_slice %157 {offsets = [0, 0], sizes = [1, 1], strides = [1, 1]} : vector<1x2xf32> to vector<1x1xf32>
    %160 = vector.shape_cast %158 : vector<8x4xf32> to vector<1x8x4xf32>
    %161 = vector.broadcast %160 : vector<1x8x4xf32> to vector<2x8x4xf32>
    %162 = arith.mulf %154, %161 : vector<2x8x4xf32>
    %cst_55 = arith.constant dense<0.000000e+00> : vector<2x8xf32>
    %163 = vector.multi_reduction <add>, %162, %cst_55 [2] : vector<2x8x4xf32> to vector<2x8xf32>
    %164 = vector.shape_cast %163 : vector<2x8xf32> to vector<2x8x1xf32>
    %cst_56 = arith.constant dense<0.000000e+00> : vector<2x1xf32>
    %165 = vector.multi_reduction <add>, %164, %cst_56 [1] : vector<2x8x1xf32> to vector<2x1xf32>
    %166 = vector.shape_cast %165 : vector<2x1xf32> to vector<2x1x1xf32>
    %167 = vector.shape_cast %159 : vector<1x1xf32> to vector<1x1x1xf32>
    %168 = vector.broadcast %167 : vector<1x1x1xf32> to vector<2x1x1xf32>
    %169 = arith.addf %166, %168 : vector<2x1x1xf32>
    %170 = vector.shape_cast %158 : vector<8x4xf32> to vector<1x8x4xf32>
    %171 = vector.broadcast %170 : vector<1x8x4xf32> to vector<2x8x4xf32>
    %172 = arith.mulf %155, %171 : vector<2x8x4xf32>
    %cst_57 = arith.constant dense<0.000000e+00> : vector<2x8xf32>
    %173 = vector.multi_reduction <add>, %172, %cst_57 [2] : vector<2x8x4xf32> to vector<2x8xf32>
    %174 = vector.shape_cast %173 : vector<2x8xf32> to vector<2x8x1xf32>
    %cst_58 = arith.constant dense<0.000000e+00> : vector<2x1xf32>
    %175 = vector.multi_reduction <add>, %174, %cst_58 [1] : vector<2x8x1xf32> to vector<2x1xf32>
    %176 = vector.shape_cast %175 : vector<2x1xf32> to vector<2x1x1xf32>
    %177 = vector.shape_cast %159 : vector<1x1xf32> to vector<1x1x1xf32>
    %178 = vector.broadcast %177 : vector<1x1x1xf32> to vector<2x1x1xf32>
    %179 = arith.addf %176, %178 : vector<2x1x1xf32>
    %180 = arith.maximumf %169, %179 : vector<2x1x1xf32>
    %181 = arith.subf %169, %180 : vector<2x1x1xf32>
    %182 = math.exp %181 : vector<2x1x1xf32>
    %183 = arith.subf %179, %180 : vector<2x1x1xf32>
    %184 = math.exp %183 : vector<2x1x1xf32>
    %185 = arith.addf %182, %184 : vector<2x1x1xf32>
    %186 = tpu.reciprocal %185 {approx = true} : vector<2x1x1xf32> -> vector<2x1x1xf32>
    %187 = vector.broadcast %182 : vector<2x1x1xf32> to vector<2x8x4xf32>
    %188 = arith.mulf %187, %154 : vector<2x8x4xf32>
    %189 = vector.broadcast %184 : vector<2x1x1xf32> to vector<2x8x4xf32>
    %190 = arith.mulf %189, %155 : vector<2x8x4xf32>
    %191 = arith.addf %188, %190 : vector<2x8x4xf32>
    %192 = vector.broadcast %186 : vector<2x1x1xf32> to vector<2x8x4xf32>
    %193 = arith.mulf %191, %192 : vector<2x8x4xf32>
    %194 = math.tanh %193 : vector<2x8x4xf32>
    %195 = vector.extract_strided_slice %156 {offsets = [8, 0], sizes = [8, 4], strides = [1, 1]} : vector<16x4xf32> to vector<8x4xf32>
    %196 = vector.extract_strided_slice %157 {offsets = [0, 1], sizes = [1, 1], strides = [1, 1]} : vector<1x2xf32> to vector<1x1xf32>
    %197 = vector.shape_cast %195 : vector<8x4xf32> to vector<1x8x4xf32>
    %198 = vector.broadcast %197 : vector<1x8x4xf32> to vector<2x8x4xf32>
    %199 = arith.mulf %154, %198 : vector<2x8x4xf32>
    %cst_59 = arith.constant dense<0.000000e+00> : vector<2x8xf32>
    %200 = vector.multi_reduction <add>, %199, %cst_59 [2] : vector<2x8x4xf32> to vector<2x8xf32>
    %201 = vector.shape_cast %200 : vector<2x8xf32> to vector<2x8x1xf32>
    %cst_60 = arith.constant dense<0.000000e+00> : vector<2x1xf32>
    %202 = vector.multi_reduction <add>, %201, %cst_60 [1] : vector<2x8x1xf32> to vector<2x1xf32>
    %203 = vector.shape_cast %202 : vector<2x1xf32> to vector<2x1x1xf32>
    %204 = vector.shape_cast %196 : vector<1x1xf32> to vector<1x1x1xf32>
    %205 = vector.broadcast %204 : vector<1x1x1xf32> to vector<2x1x1xf32>
    %206 = arith.addf %203, %205 : vector<2x1x1xf32>
    %207 = vector.shape_cast %195 : vector<8x4xf32> to vector<1x8x4xf32>
    %208 = vector.broadcast %207 : vector<1x8x4xf32> to vector<2x8x4xf32>
    %209 = arith.mulf %155, %208 : vector<2x8x4xf32>
    %cst_61 = arith.constant dense<0.000000e+00> : vector<2x8xf32>
    %210 = vector.multi_reduction <add>, %209, %cst_61 [2] : vector<2x8x4xf32> to vector<2x8xf32>
    %211 = vector.shape_cast %210 : vector<2x8xf32> to vector<2x8x1xf32>
    %cst_62 = arith.constant dense<0.000000e+00> : vector<2x1xf32>
    %212 = vector.multi_reduction <add>, %211, %cst_62 [1] : vector<2x8x1xf32> to vector<2x1xf32>
    %213 = vector.shape_cast %212 : vector<2x1xf32> to vector<2x1x1xf32>
    %214 = vector.shape_cast %196 : vector<1x1xf32> to vector<1x1x1xf32>
    %215 = vector.broadcast %214 : vector<1x1x1xf32> to vector<2x1x1xf32>
    %216 = arith.addf %213, %215 : vector<2x1x1xf32>
    %217 = arith.maximumf %206, %216 : vector<2x1x1xf32>
    %218 = arith.subf %206, %217 : vector<2x1x1xf32>
    %219 = math.exp %218 : vector<2x1x1xf32>
    %220 = arith.subf %216, %217 : vector<2x1x1xf32>
    %221 = math.exp %220 : vector<2x1x1xf32>
    %222 = arith.addf %219, %221 : vector<2x1x1xf32>
    %223 = tpu.reciprocal %222 {approx = true} : vector<2x1x1xf32> -> vector<2x1x1xf32>
    %224 = vector.broadcast %219 : vector<2x1x1xf32> to vector<2x8x4xf32>
    %225 = arith.mulf %224, %154 : vector<2x8x4xf32>
    %226 = vector.broadcast %221 : vector<2x1x1xf32> to vector<2x8x4xf32>
    %227 = arith.mulf %226, %155 : vector<2x8x4xf32>
    %228 = arith.addf %225, %227 : vector<2x8x4xf32>
    %229 = vector.broadcast %223 : vector<2x1x1xf32> to vector<2x8x4xf32>
    %230 = arith.mulf %228, %229 : vector<2x8x4xf32>
    %231 = math.tanh %230 : vector<2x8x4xf32>
    %c0_63 = arith.constant 0 : index
    %c0_64 = arith.constant 0 : index
    %c0_65 = arith.constant 0 : index
    %232 = vector.load %arg2[%c0_63, %c0_64, %c0_65] : memref<2x8x4xf32, #tpu.memory_space<vmem>>, vector<2x8x4xf32>
    %cst_66 = arith.constant 5.000000e-01 : f32
    %233 = vector.broadcast %cst_66 : f32 to vector<2x8x4xf32>
    %234 = arith.mulf %233, %231 : vector<2x8x4xf32>
    %235 = math.exp %234 : vector<2x8x4xf32>
    %236 = arith.mulf %232, %235 : vector<2x8x4xf32>
    %237 = arith.addf %194, %236 : vector<2x8x4xf32>
    %c0_67 = arith.constant 0 : index
    %c0_68 = arith.constant 0 : index
    %c0_69 = arith.constant 0 : index
    %238 = vector.load %arg4[%c0_67, %c0_68, %c0_69] : memref<2x8x4xf32, #tpu.memory_space<vmem>>, vector<2x8x4xf32>
    tpu.vector_store %arg4[%c0_67, %c0_68, %c0_69], %194 {strides = array<i32>} : memref<2x8x4xf32, #tpu.memory_space<vmem>>, vector<2x8x4xf32>,
    %c0_70 = arith.constant 0 : index
    %c0_71 = arith.constant 0 : index
    %c0_72 = arith.constant 0 : index
    %239 = vector.load %arg5[%c0_70, %c0_71, %c0_72] : memref<2x8x4xf32, #tpu.memory_space<vmem>>, vector<2x8x4xf32>
    tpu.vector_store %arg5[%c0_70, %c0_71, %c0_72], %231 {strides = array<i32>} : memref<2x8x4xf32, #tpu.memory_space<vmem>>, vector<2x8x4xf32>,
    %c0_73 = arith.constant 0 : index
    %c0_74 = arith.constant 0 : index
    %c0_75 = arith.constant 0 : index
    %240 = vector.load %arg6[%c0_73, %c0_74, %c0_75] : memref<2x8x4xf32, #tpu.memory_space<vmem>>, vector<2x8x4xf32>
    tpu.vector_store %arg6[%c0_73, %c0_74, %c0_75], %237 {strides = array<i32>} : memref<2x8x4xf32, #tpu.memory_space<vmem>>, vector<2x8x4xf32>,
    %241 = vector.extract_strided_slice %237 {offsets = [0, 0, 0], sizes = [2, 1, 4], strides = [1, 1, 1]} : vector<2x8x4xf32> to vector<2x1x4xf32>
    %242 = vector.extract_strided_slice %237 {offsets = [0, 1, 0], sizes = [2, 1, 4], strides = [1, 1, 1]} : vector<2x8x4xf32> to vector<2x1x4xf32>
    %243 = tpu.concatenate %241, %242 in 2 : vector<2x1x4xf32>, vector<2x1x4xf32> -> vector<2x1x8xf32>
    %244 = vector.extract_strided_slice %237 {offsets = [0, 2, 0], sizes = [2, 1, 4], strides = [1, 1, 1]} : vector<2x8x4xf32> to vector<2x1x4xf32>
    %245 = vector.extract_strided_slice %237 {offsets = [0, 3, 0], sizes = [2, 1, 4], strides = [1, 1, 1]} : vector<2x8x4xf32> to vector<2x1x4xf32>
    %246 = tpu.concatenate %244, %245 in 2 : vector<2x1x4xf32>, vector<2x1x4xf32> -> vector<2x1x8xf32>
    %247 = vector.extract_strided_slice %237 {offsets = [0, 4, 0], sizes = [2, 1, 4], strides = [1, 1, 1]} : vector<2x8x4xf32> to vector<2x1x4xf32>
    %248 = vector.extract_strided_slice %237 {offsets = [0, 5, 0], sizes = [2, 1, 4], strides = [1, 1, 1]} : vector<2x8x4xf32> to vector<2x1x4xf32>
    %249 = tpu.concatenate %247, %248 in 2 : vector<2x1x4xf32>, vector<2x1x4xf32> -> vector<2x1x8xf32>
    %250 = vector.extract_strided_slice %237 {offsets = [0, 6, 0], sizes = [2, 1, 4], strides = [1, 1, 1]} : vector<2x8x4xf32> to vector<2x1x4xf32>
    %251 = vector.extract_strided_slice %237 {offsets = [0, 7, 0], sizes = [2, 1, 4], strides = [1, 1, 1]} : vector<2x8x4xf32> to vector<2x1x4xf32>
    %252 = tpu.concatenate %250, %251 in 2 : vector<2x1x4xf32>, vector<2x1x4xf32> -> vector<2x1x8xf32>
    %253 = tpu.concatenate %243, %246, %249, %252 in 1 : vector<2x1x8xf32>, vector<2x1x8xf32>, vector<2x1x8xf32>, vector<2x1x8xf32> -> vector<2x4x8xf32>
    %254 = tpu.transpose %253, [0, 2, 1] : vector<2x4x8xf32> -> vector<2x8x4xf32>
    %255 = vector.shape_cast %254 : vector<2x8x4xf32> to vector<16x4xf32>
    %256 = tpu.concatenate %255, %255 in 1 : vector<16x4xf32>, vector<16x4xf32> -> vector<16x8xf32>
    %c108 = arith.constant 108 : index
    %c0_76 = arith.constant 0 : index
    %257 = vector.load %arg3[%c108, %c0_76] : memref<228x16xf32, #tpu.memory_space<vmem>>, vector<24x16xf32>
    %c221 = arith.constant 221 : index
    %c0_77 = arith.constant 0 : index
    %258 = vector.load %arg3[%c221, %c0_77] : memref<228x16xf32, #tpu.memory_space<vmem>>, vector<1x16xf32>
    %c222 = arith.constant 222 : index
    %c0_78 = arith.constant 0 : index
    %259 = vector.load %arg3[%c222, %c0_78] : memref<228x16xf32, #tpu.memory_space<vmem>>, vector<1x16xf32>
    %c223 = arith.constant 223 : index
    %c0_79 = arith.constant 0 : index
    %260 = vector.load %arg3[%c223, %c0_79] : memref<228x16xf32, #tpu.memory_space<vmem>>, vector<1x16xf32>
    %c132 = arith.constant 132 : index
    %c0_80 = arith.constant 0 : index
    %261 = vector.load %arg3[%c132, %c0_80] : memref<228x16xf32, #tpu.memory_space<vmem>>, vector<48x16xf32>
    %c224 = arith.constant 224 : index
    %c0_81 = arith.constant 0 : index
    %262 = vector.load %arg3[%c224, %c0_81] : memref<228x16xf32, #tpu.memory_space<vmem>>, vector<1x16xf32>
    %c225 = arith.constant 225 : index
    %c0_82 = arith.constant 0 : index
    %263 = vector.load %arg3[%c225, %c0_82] : memref<228x16xf32, #tpu.memory_space<vmem>>, vector<1x16xf32>
    %c226 = arith.constant 226 : index
    %c0_83 = arith.constant 0 : index
    %264 = vector.load %arg3[%c226, %c0_83] : memref<228x16xf32, #tpu.memory_space<vmem>>, vector<1x16xf32>
    %c1_i32_84 = arith.constant 1 : i32
    %265 = tpu.dynamic_rotate %256 by %c1_i32_84 dim 0 : vector<16x8xf32>, i32 -> vector<16x8xf32>
    %cst_85 = arith.constant 0.000000e+00 : f32
    %266 = vector.shape_cast %18 : vector<16x1xi1> to vector<16x1xi1>
    %267 = vector.broadcast %266 : vector<16x1xi1> to vector<16x8xi1>
    %268 = vector.broadcast %cst_85 : f32 to vector<16x8xf32>
    %269 = arith.select %267, %268, %265 : vector<16x8xi1>, vector<16x8xf32>
    %c15_i32_86 = arith.constant 15 : i32
    %270 = tpu.dynamic_rotate %256 by %c15_i32_86 dim 0 : vector<16x8xf32>, i32 -> vector<16x8xf32>
    %cst_87 = arith.constant 0.000000e+00 : f32
    %271 = vector.shape_cast %20 : vector<16x1xi1> to vector<16x1xi1>
    %272 = vector.broadcast %271 : vector<16x1xi1> to vector<16x8xi1>
    %273 = vector.broadcast %cst_87 : f32 to vector<16x8xf32>
    %274 = arith.select %272, %273, %270 : vector<16x8xi1>, vector<16x8xf32>
    %275 = tpu.concatenate %269, %256, %274 in 1 : vector<16x8xf32>, vector<16x8xf32>, vector<16x8xf32> -> vector<16x24xf32>
    %cst_88 = arith.constant dense<0.000000e+00> : vector<16x16xf32>
    %276 = tpu.matmul %275, %257, %cst_88 {dimension_numbers = #tpu.dot_dimension_numbers<[1], [0], [0], [1], [0, 0, 1, 1], [], []>} : vector<16x24xf32>, vector<24x16xf32>, vector<16x16xf32> -> vector<16x16xf32>
    %277 = vector.broadcast %258 : vector<1x16xf32> to vector<16x16xf32>
    %278 = arith.addf %276, %277 : vector<16x16xf32>
    %cst_89 = arith.constant dense<0.000000e+00> : vector<16xf32>
    %279 = vector.multi_reduction <add>, %278, %cst_89 [0] : vector<16x16xf32> to vector<16xf32>
    %280 = vector.shape_cast %279 : vector<16xf32> to vector<1x16xf32>
    %cst_90 = arith.constant 1.600000e+01 : f32
    %281 = vector.broadcast %cst_90 : f32 to vector<1x16xf32>
    %282 = arith.divf %280, %281 : vector<1x16xf32>
    %283 = vector.broadcast %282 : vector<1x16xf32> to vector<16x16xf32>
    %284 = arith.subf %278, %283 : vector<16x16xf32>
    %285 = arith.mulf %284, %284 : vector<16x16xf32>
    %cst_91 = arith.constant dense<0.000000e+00> : vector<16xf32>
    %286 = vector.multi_reduction <add>, %285, %cst_91 [0] : vector<16x16xf32> to vector<16xf32>
    %287 = vector.shape_cast %286 : vector<16xf32> to vector<1x16xf32>
    %cst_92 = arith.constant 1.600000e+01 : f32
    %288 = vector.broadcast %cst_92 : f32 to vector<1x16xf32>
    %289 = arith.divf %287, %288 : vector<1x16xf32>
    %290 = vector.broadcast %282 : vector<1x16xf32> to vector<16x16xf32>
    %291 = arith.subf %278, %290 : vector<16x16xf32>
    %cst_93 = arith.constant 9.99999974E-6 : f32
    %292 = vector.broadcast %cst_93 : f32 to vector<1x16xf32>
    %293 = arith.addf %289, %292 : vector<1x16xf32>
    %294 = math.rsqrt %293 : vector<1x16xf32>
    %295 = vector.broadcast %294 : vector<1x16xf32> to vector<16x16xf32>
    %296 = arith.mulf %291, %295 : vector<16x16xf32>
    %297 = vector.broadcast %259 : vector<1x16xf32> to vector<16x16xf32>
    %298 = arith.mulf %296, %297 : vector<16x16xf32>
    %299 = vector.broadcast %260 : vector<1x16xf32> to vector<16x16xf32>
    %300 = arith.addf %298, %299 : vector<16x16xf32>
    %cst_94 = arith.constant 0.000000e+00 : f32
    %301 = vector.broadcast %cst_94 : f32 to vector<16x16xf32>
    %302 = arith.cmpf ogt, %300, %301 : vector<16x16xf32>
    %cst_95 = arith.constant 0.00999999977 : f32
    %303 = vector.broadcast %cst_95 : f32 to vector<16x16xf32>
    %304 = arith.mulf %303, %300 : vector<16x16xf32>
    %305 = arith.select %302, %300, %304 : vector<16x16xi1>, vector<16x16xf32>
    %c1_i32_96 = arith.constant 1 : i32
    %306 = tpu.dynamic_rotate %305 by %c1_i32_96 dim 0 : vector<16x16xf32>, i32 -> vector<16x16xf32>
    %cst_97 = arith.constant 0xFF800000 : f32
    %307 = vector.shape_cast %18 : vector<16x1xi1> to vector<16x1xi1>
    %308 = vector.broadcast %307 : vector<16x1xi1> to vector<16x16xi1>
    %309 = vector.broadcast %cst_97 : f32 to vector<16x16xf32>
    %310 = arith.select %308, %309, %306 : vector<16x16xi1>, vector<16x16xf32>
    %311 = arith.maximumf %310, %305 : vector<16x16xf32>
    %c15_i32_98 = arith.constant 15 : i32
    %312 = tpu.dynamic_rotate %305 by %c15_i32_98 dim 0 : vector<16x16xf32>, i32 -> vector<16x16xf32>
    %cst_99 = arith.constant 0xFF800000 : f32
    %313 = vector.shape_cast %20 : vector<16x1xi1> to vector<16x1xi1>
    %314 = vector.broadcast %313 : vector<16x1xi1> to vector<16x16xi1>
    %315 = vector.broadcast %cst_99 : f32 to vector<16x16xf32>
    %316 = arith.select %314, %315, %312 : vector<16x16xi1>, vector<16x16xf32>
    %317 = arith.maximumf %311, %316 : vector<16x16xf32>
    %c1_i32_100 = arith.constant 1 : i32
    %318 = tpu.dynamic_rotate %317 by %c1_i32_100 dim 0 : vector<16x16xf32>, i32 -> vector<16x16xf32>
    %cst_101 = arith.constant 0.000000e+00 : f32
    %319 = vector.shape_cast %18 : vector<16x1xi1> to vector<16x1xi1>
    %320 = vector.broadcast %319 : vector<16x1xi1> to vector<16x16xi1>
    %321 = vector.broadcast %cst_101 : f32 to vector<16x16xf32>
    %322 = arith.select %320, %321, %318 : vector<16x16xi1>, vector<16x16xf32>
    %c15_i32_102 = arith.constant 15 : i32
    %323 = tpu.dynamic_rotate %317 by %c15_i32_102 dim 0 : vector<16x16xf32>, i32 -> vector<16x16xf32>
    %cst_103 = arith.constant 0.000000e+00 : f32
    %324 = vector.shape_cast %20 : vector<16x1xi1> to vector<16x1xi1>
    %325 = vector.broadcast %324 : vector<16x1xi1> to vector<16x16xi1>
    %326 = vector.broadcast %cst_103 : f32 to vector<16x16xf32>
    %327 = arith.select %325, %326, %323 : vector<16x16xi1>, vector<16x16xf32>
    %328 = tpu.concatenate %322, %317, %327 in 1 : vector<16x16xf32>, vector<16x16xf32>, vector<16x16xf32> -> vector<16x48xf32>
    %cst_104 = arith.constant dense<0.000000e+00> : vector<16x16xf32>
    %329 = tpu.matmul %328, %261, %cst_104 {dimension_numbers = #tpu.dot_dimension_numbers<[1], [0], [0], [1], [0, 0, 1, 1], [], []>} : vector<16x48xf32>, vector<48x16xf32>, vector<16x16xf32> -> vector<16x16xf32>
    %330 = vector.broadcast %262 : vector<1x16xf32> to vector<16x16xf32>
    %331 = arith.addf %329, %330 : vector<16x16xf32>
    %cst_105 = arith.constant dense<0.000000e+00> : vector<16xf32>
    %332 = vector.multi_reduction <add>, %331, %cst_105 [0] : vector<16x16xf32> to vector<16xf32>
    %333 = vector.shape_cast %332 : vector<16xf32> to vector<1x16xf32>
    %cst_106 = arith.constant 1.600000e+01 : f32
    %334 = vector.broadcast %cst_106 : f32 to vector<1x16xf32>
    %335 = arith.divf %333, %334 : vector<1x16xf32>
    %336 = vector.broadcast %335 : vector<1x16xf32> to vector<16x16xf32>
    %337 = arith.subf %331, %336 : vector<16x16xf32>
    %338 = arith.mulf %337, %337 : vector<16x16xf32>
    %cst_107 = arith.constant dense<0.000000e+00> : vector<16xf32>
    %339 = vector.multi_reduction <add>, %338, %cst_107 [0] : vector<16x16xf32> to vector<16xf32>
    %340 = vector.shape_cast %339 : vector<16xf32> to vector<1x16xf32>
    %cst_108 = arith.constant 1.600000e+01 : f32
    %341 = vector.broadcast %cst_108 : f32 to vector<1x16xf32>
    %342 = arith.divf %340, %341 : vector<1x16xf32>
    %343 = vector.broadcast %335 : vector<1x16xf32> to vector<16x16xf32>
    %344 = arith.subf %331, %343 : vector<16x16xf32>
    %cst_109 = arith.constant 9.99999974E-6 : f32
    %345 = vector.broadcast %cst_109 : f32 to vector<1x16xf32>
    %346 = arith.addf %342, %345 : vector<1x16xf32>
    %347 = math.rsqrt %346 : vector<1x16xf32>
    %348 = vector.broadcast %347 : vector<1x16xf32> to vector<16x16xf32>
    %349 = arith.mulf %344, %348 : vector<16x16xf32>
    %350 = vector.broadcast %263 : vector<1x16xf32> to vector<16x16xf32>
    %351 = arith.mulf %349, %350 : vector<16x16xf32>
    %352 = vector.broadcast %264 : vector<1x16xf32> to vector<16x16xf32>
    %353 = arith.addf %351, %352 : vector<16x16xf32>
    %cst_110 = arith.constant 0.000000e+00 : f32
    %354 = vector.broadcast %cst_110 : f32 to vector<16x16xf32>
    %355 = arith.cmpf ogt, %353, %354 : vector<16x16xf32>
    %cst_111 = arith.constant 0.00999999977 : f32
    %356 = vector.broadcast %cst_111 : f32 to vector<16x16xf32>
    %357 = arith.mulf %356, %353 : vector<16x16xf32>
    %358 = arith.select %355, %353, %357 : vector<16x16xi1>, vector<16x16xf32>
    %c1_i32_112 = arith.constant 1 : i32
    %359 = tpu.dynamic_rotate %358 by %c1_i32_112 dim 0 : vector<16x16xf32>, i32 -> vector<16x16xf32>
    %cst_113 = arith.constant 0xFF800000 : f32
    %360 = vector.shape_cast %18 : vector<16x1xi1> to vector<16x1xi1>
    %361 = vector.broadcast %360 : vector<16x1xi1> to vector<16x16xi1>
    %362 = vector.broadcast %cst_113 : f32 to vector<16x16xf32>
    %363 = arith.select %361, %362, %359 : vector<16x16xi1>, vector<16x16xf32>
    %364 = arith.maximumf %363, %358 : vector<16x16xf32>
    %c15_i32_114 = arith.constant 15 : i32
    %365 = tpu.dynamic_rotate %358 by %c15_i32_114 dim 0 : vector<16x16xf32>, i32 -> vector<16x16xf32>
    %cst_115 = arith.constant 0xFF800000 : f32
    %366 = vector.shape_cast %20 : vector<16x1xi1> to vector<16x1xi1>
    %367 = vector.broadcast %366 : vector<16x1xi1> to vector<16x16xi1>
    %368 = vector.broadcast %cst_115 : f32 to vector<16x16xf32>
    %369 = arith.select %367, %368, %365 : vector<16x16xi1>, vector<16x16xf32>
    %370 = arith.maximumf %364, %369 : vector<16x16xf32>
    %371 = vector.shape_cast %370 : vector<16x16xf32> to vector<2x8x16xf32>
    %372 = tpu.transpose %371, [0, 2, 1] : vector<2x8x16xf32> -> vector<2x16x8xf32>
    %373 = vector.extract_strided_slice %372 {offsets = [0, 0, 0], sizes = [2, 1, 8], strides = [1, 1, 1]} : vector<2x16x8xf32> to vector<2x1x8xf32>
    %374 = vector.extract_strided_slice %372 {offsets = [0, 1, 0], sizes = [2, 1, 8], strides = [1, 1, 1]} : vector<2x16x8xf32> to vector<2x1x8xf32>
    %375 = tpu.concatenate %373, %374 in 2 : vector<2x1x8xf32>, vector<2x1x8xf32> -> vector<2x1x16xf32>
    %376 = vector.extract_strided_slice %372 {offsets = [0, 8, 0], sizes = [2, 1, 8], strides = [1, 1, 1]} : vector<2x16x8xf32> to vector<2x1x8xf32>
    %377 = vector.extract_strided_slice %372 {offsets = [0, 9, 0], sizes = [2, 1, 8], strides = [1, 1, 1]} : vector<2x16x8xf32> to vector<2x1x8xf32>
    %378 = tpu.concatenate %376, %377 in 2 : vector<2x1x8xf32>, vector<2x1x8xf32> -> vector<2x1x16xf32>
    %379 = vector.extract_strided_slice %372 {offsets = [0, 2, 0], sizes = [2, 1, 8], strides = [1, 1, 1]} : vector<2x16x8xf32> to vector<2x1x8xf32>
    %380 = vector.extract_strided_slice %372 {offsets = [0, 3, 0], sizes = [2, 1, 8], strides = [1, 1, 1]} : vector<2x16x8xf32> to vector<2x1x8xf32>
    %381 = tpu.concatenate %379, %380 in 2 : vector<2x1x8xf32>, vector<2x1x8xf32> -> vector<2x1x16xf32>
    %382 = vector.extract_strided_slice %372 {offsets = [0, 10, 0], sizes = [2, 1, 8], strides = [1, 1, 1]} : vector<2x16x8xf32> to vector<2x1x8xf32>
    %383 = vector.extract_strided_slice %372 {offsets = [0, 11, 0], sizes = [2, 1, 8], strides = [1, 1, 1]} : vector<2x16x8xf32> to vector<2x1x8xf32>
    %384 = tpu.concatenate %382, %383 in 2 : vector<2x1x8xf32>, vector<2x1x8xf32> -> vector<2x1x16xf32>
    %385 = vector.extract_strided_slice %372 {offsets = [0, 4, 0], sizes = [2, 1, 8], strides = [1, 1, 1]} : vector<2x16x8xf32> to vector<2x1x8xf32>
    %386 = vector.extract_strided_slice %372 {offsets = [0, 5, 0], sizes = [2, 1, 8], strides = [1, 1, 1]} : vector<2x16x8xf32> to vector<2x1x8xf32>
    %387 = tpu.concatenate %385, %386 in 2 : vector<2x1x8xf32>, vector<2x1x8xf32> -> vector<2x1x16xf32>
    %388 = vector.extract_strided_slice %372 {offsets = [0, 12, 0], sizes = [2, 1, 8], strides = [1, 1, 1]} : vector<2x16x8xf32> to vector<2x1x8xf32>
    %389 = vector.extract_strided_slice %372 {offsets = [0, 13, 0], sizes = [2, 1, 8], strides = [1, 1, 1]} : vector<2x16x8xf32> to vector<2x1x8xf32>
    %390 = tpu.concatenate %388, %389 in 2 : vector<2x1x8xf32>, vector<2x1x8xf32> -> vector<2x1x16xf32>
    %391 = vector.extract_strided_slice %372 {offsets = [0, 6, 0], sizes = [2, 1, 8], strides = [1, 1, 1]} : vector<2x16x8xf32> to vector<2x1x8xf32>
    %392 = vector.extract_strided_slice %372 {offsets = [0, 7, 0], sizes = [2, 1, 8], strides = [1, 1, 1]} : vector<2x16x8xf32> to vector<2x1x8xf32>
    %393 = tpu.concatenate %391, %392 in 2 : vector<2x1x8xf32>, vector<2x1x8xf32> -> vector<2x1x16xf32>
    %394 = vector.extract_strided_slice %372 {offsets = [0, 14, 0], sizes = [2, 1, 8], strides = [1, 1, 1]} : vector<2x16x8xf32> to vector<2x1x8xf32>
    %395 = vector.extract_strided_slice %372 {offsets = [0, 15, 0], sizes = [2, 1, 8], strides = [1, 1, 1]} : vector<2x16x8xf32> to vector<2x1x8xf32>
    %396 = tpu.concatenate %394, %395 in 2 : vector<2x1x8xf32>, vector<2x1x8xf32> -> vector<2x1x16xf32>
    %397 = tpu.concatenate %375, %381, %387, %393 in 1 : vector<2x1x16xf32>, vector<2x1x16xf32>, vector<2x1x16xf32>, vector<2x1x16xf32> -> vector<2x4x16xf32>
    %398 = tpu.concatenate %378, %384, %390, %396 in 1 : vector<2x1x16xf32>, vector<2x1x16xf32>, vector<2x1x16xf32>, vector<2x1x16xf32> -> vector<2x4x16xf32>
    %399 = tpu.concatenate %397, %398 in 2 : vector<2x4x16xf32>, vector<2x4x16xf32> -> vector<2x4x32xf32>
    %400 = vector.shape_cast %399 : vector<2x4x32xf32> to vector<8x32xf32>
    %c180 = arith.constant 180 : index
    %c0_116 = arith.constant 0 : index
    %401 = vector.load %arg3[%c180, %c0_116] : memref<228x16xf32, #tpu.memory_space<vmem>>, vector<32x12xf32>
    %cst_117 = arith.constant dense<0.000000e+00> : vector<8x12xf32>
    %402 = tpu.matmul %400, %401, %cst_117 {dimension_numbers = #tpu.dot_dimension_numbers<[1], [0], [0], [1], [0, 0, 1, 1], [], []>} : vector<8x32xf32>, vector<32x12xf32>, vector<8x12xf32> -> vector<8x12xf32>
    %c227 = arith.constant 227 : index
    %c0_118 = arith.constant 0 : index
    %403 = vector.load %arg3[%c227, %c0_118] : memref<228x16xf32, #tpu.memory_space<vmem>>, vector<1x12xf32>
    %404 = vector.broadcast %403 : vector<1x12xf32> to vector<8x12xf32>
    %405 = arith.addf %402, %404 : vector<8x12xf32>
    %406 = vector.extract_strided_slice %405 {offsets = [0, 0], sizes = [8, 8], strides = [1, 1]} : vector<8x12xf32> to vector<8x8xf32>
    %c0_119 = arith.constant 0 : index
    %c0_120 = arith.constant 0 : index
    %407 = vector.load %arg7[%c0_119, %c0_120] : memref<8x8xf32, #tpu.memory_space<vmem>>, vector<8x8xf32>
    tpu.vector_store %arg7[%c0_119, %c0_120], %406 {strides = array<i32>} : memref<8x8xf32, #tpu.memory_space<vmem>>, vector<8x8xf32>,
    %408 = vector.extract_strided_slice %405 {offsets = [0, 8], sizes = [8, 4], strides = [1, 1]} : vector<8x12xf32> to vector<8x4xf32>
    %c0_121 = arith.constant 0 : index
    %c0_122 = arith.constant 0 : index
    %409 = vector.load %arg8[%c0_121, %c0_122] : memref<8x4xf32, #tpu.memory_space<vmem>>, vector<8x4xf32>
    tpu.vector_store %arg8[%c0_121, %c0_122], %408 {strides = array<i32>} : memref<8x4xf32, #tpu.memory_space<vmem>>, vector<8x4xf32>,
    return
  }
}

</mosaic_0001>

<llo_original>
// kernel: joint_vae_forward.1
$region0: #{joint_vae_forward.1}
  #allocation0 [shape = 'u32[]', space=smem, size = 0x4, offset = 0x4, fixed_abs, tag = 'smem constant byte address 0x4 - core index']
  #allocation1 [shape = 'u32[72,128]{1,0:T(1,128)}', space=vmem, size = 0x9000, scoped, tag = 'internal scratch']
  %s0 = inlined_call_operand.vmem [shape: f32[2,4,8], index: 0, kind: input, shape index: {}]
  %s1 = inlined_call_operand.vmem [shape: f32[8,4], index: 1, kind: input, shape index: {}]
  %s2 = inlined_call_operand.vmem [shape: f32[2,8,4], index: 2, kind: input, shape index: {}]
  %s3 = inlined_call_operand.vmem [shape: f32[228,16], index: 3, kind: input, shape index: {}]
  %s4 = inlined_call_operand.vmem [shape: f32[2,8,4], index: 4, kind: output, shape index: {0}]
  %s5 = inlined_call_operand.vmem [shape: f32[2,8,4], index: 5, kind: output, shape index: {1}]
  %s6 = inlined_call_operand.vmem [shape: f32[2,8,4], index: 6, kind: output, shape index: {2}]
  %s7 = inlined_call_operand.vmem [shape: f32[8,8], index: 7, kind: output, shape index: {3}]
  %s8 = inlined_call_operand.vmem [shape: f32[8,4], index: 8, kind: output, shape index: {4}]
  %9 = xla_tuple %s4, %s5, %s6, %s7, %s8
  %s10 = sld [smem:[#allocation0]]
  $region58: #{joint_vae_forward.1} parent=0
    _
  %s12 = ssub.s32 1, %s10
  %s13 = scalar_select 0, %s12, %s10
  // Predicated region
  $region2: #{joint_vae_forward.1} parent=0 // pred_check
    _
  $region3: #{joint_vae_forward.1} parent=0 // pred_check_branch
    %15 = sbr.rel (0) target = $region5
  $region4: #{joint_vae_forward.1} parent=0 // pred_region
    _
  $region5: #{joint_vae_forward.1} parent=0 // pred_fallthru
    _
  // Predicated region
  $region6: #{joint_vae_forward.1} parent=0 // pred_check
    _
  $region7: #{joint_vae_forward.1} parent=0 // pred_check_branch
    %17 = sbr.rel (0) target = $region9
  $region8: #{joint_vae_forward.1} parent=0 // pred_region
    _
  $region9: #{joint_vae_forward.1} parent=0 // pred_fallthru
    _
  // Predicated region
  $region10: #{joint_vae_forward.1} parent=0 // pred_check
    _
  $region11: #{joint_vae_forward.1} parent=0 // pred_check_branch
    %19 = sbr.rel (0) target = $region13
  $region12: #{joint_vae_forward.1} parent=0 // pred_region
    _
  $region13: #{joint_vae_forward.1} parent=0 // pred_fallthru
    _
  // Predicated region
  $region14: #{joint_vae_forward.1} parent=0 // pred_check
    _
  $region15: #{joint_vae_forward.1} parent=0 // pred_check_branch
    %21 = sbr.rel (0) target = $region17
  $region16: #{joint_vae_forward.1} parent=0 // pred_region
    _
  $region17: #{joint_vae_forward.1} parent=0 // pred_fallthru
    _
  %v22 = vlaneseq
  %v23 = vshrl.u32 %v22, 7
  %v24 = vadd.s32 %v23, 8
  %vm25 = vcmp.lt.s32.totalorder %v23, 0
  %v26 = vsub.s32 0, %v23
  %v27 = vsel %vm25, %v26, %v23
  %v28 = vshrl.u32 %v27, 3
  %v29 = vand.u32 %v27, 7
  %v30 = vsub.s32 0, %v29
  %v31 = vsel %vm25, %v30, %v29
  %vm32 = vcmp.lt.s32.totalorder %v24, 0
  %v33 = vsub.s32 0, %v24
  %v34 = vsel %vm32, %v33, %v24
  %v35 = vshrl.u32 %v34, 3
  %v36 = vand.u32 %v34, 7
  %v37 = vsub.s32 0, %v36
  %v38 = vsel %vm32, %v37, %v36
  %vm39 = vcmp.ne.s32.totalorder %v31, 0
  %vm40 = vcmp.ne.s32.totalorder %v38, 0
  %vm41 = vcmp.lt.s32.totalorder %v31, 0
  %vm42 = vcmp.lt.s32.totalorder %v38, 0
  %vm43 = vmand %vm41, %vm39
  %vm44 = vmand %vm42, %vm40
  %v45 = vadd.s32 %v31, 8
  %v46 = vadd.s32 %v38, 8
  %v47 = vsel %vm43, %v45, %v31
  %v48 = vsel %vm44, %v46, %v38
  %vm49 = vcmp.eq.s32.totalorder %v47, 0
  %vm50 = vcmp.eq.s32.totalorder %v48, 0
  %vm51 = vcmp.eq.s32.totalorder %v47, 7
  %vm52 = vcmp.eq.s32.totalorder %v48, 7
  %v53 = vld [vmem:[%s0] sm:$0xf]
  %v54 = vld [vmem:[%s0 + $0x4] sm:$0xf]
  %55 = vxpose.xlu0.b32.start [1/16] %v53, 128
  %56 = vxpose.xlu0.b32.cont [2/16] 0.0, 128
  %57 = vxpose.xlu0.b32.cont [3/16] 0.0, 128
  %58 = vxpose.xlu0.b32.cont [4/16] 0.0, 128
  %59 = vxpose.xlu0.b32.cont [5/16] 0.0, 128
  %60 = vxpose.xlu0.b32.cont [6/16] 0.0, 128
  %61 = vxpose.xlu0.b32.cont [7/16] 0.0, 128
  %62 = vxpose.xlu0.b32.cont [8/16] 0.0, 128
  %63 = vxpose.xlu0.b32.cont [9/16] 0.0, 128
  %64 = vxpose.xlu0.b32.cont [10/16] 0.0, 128
  %65 = vxpose.xlu0.b32.cont [11/16] 0.0, 128
  %66 = vxpose.xlu0.b32.cont [12/16] 0.0, 128
  %67 = vxpose.xlu0.b32.cont [13/16] 0.0, 128
  %68 = vxpose.xlu0.b32.cont [14/16] 0.0, 128
  %69 = vxpose.xlu0.b32.cont [15/16] 0.0, 128
  %70 = vxpose.xlu0.b32.end [16/16] 0.0, 128
  %v71 = vpop.trf.xlu0
  %v72 = vpop.trf.xlu0
  %v73 = vpop.trf.xlu0
  %v74 = vpop.trf.xlu0
  %v75 = vpop.trf.xlu0
  %v76 = vpop.trf.xlu0
  %v77 = vpop.trf.xlu0
  %v78 = vpop.trf.xlu0
  %v79 = vpop.trf.xlu0
  %v80 = vpop.trf.xlu0
  %v81 = vpop.trf.xlu0
  %v82 = vpop.trf.xlu0
  %v83 = vpop.trf.xlu0
  %v84 = vpop.trf.xlu0
  %v85 = vpop.trf.xlu0
  %v86 = vpop.trf.xlu0
  %87 = vxpose.xlu0.b32.start [1/16] %v54, 128
  %88 = vxpose.xlu0.b32.cont [2/16] 0.0, 128
  %89 = vxpose.xlu0.b32.cont [3/16] 0.0, 128
  %90 = vxpose.xlu0.b32.cont [4/16] 0.0, 128
  %91 = vxpose.xlu0.b32.cont [5/16] 0.0, 128
  %92 = vxpose.xlu0.b32.cont [6/16] 0.0, 128
  %93 = vxpose.xlu0.b32.cont [7/16] 0.0, 128
  %94 = vxpose.xlu0.b32.cont [8/16] 0.0, 128
  %95 = vxpose.xlu0.b32.cont [9/16] 0.0, 128
  %96 = vxpose.xlu0.b32.cont [10/16] 0.0, 128
  %97 = vxpose.xlu0.b32.cont [11/16] 0.0, 128
  %98 = vxpose.xlu0.b32.cont [12/16] 0.0, 128
  %99 = vxpose.xlu0.b32.cont [13/16] 0.0, 128
  %100 = vxpose.xlu0.b32.cont [14/16] 0.0, 128
  %101 = vxpose.xlu0.b32.cont [15/16] 0.0, 128
  %102 = vxpose.xlu0.b32.end [16/16] 0.0, 128
  %v103 = vpop.trf.xlu0
  %v104 = vpop.trf.xlu0
  %v105 = vpop.trf.xlu0
  %v106 = vpop.trf.xlu0
  %v107 = vpop.trf.xlu0
  %v108 = vpop.trf.xlu0
  %v109 = vpop.trf.xlu0
  %v110 = vpop.trf.xlu0
  %v111 = vpop.trf.xlu0
  %v112 = vpop.trf.xlu0
  %v113 = vpop.trf.xlu0
  %v114 = vpop.trf.xlu0
  %v115 = vpop.trf.xlu0
  %v116 = vpop.trf.xlu0
  %v117 = vpop.trf.xlu0
  %v118 = vpop.trf.xlu0
  %v119 = vld [vmem:[%s1] sm:$0xff]
  %v120 = vld [vmem:[%s3] sm:$0xf]
  %v121 = vld [vmem:[%s3 + $0xd4] sm:$0x1]
  %v122 = vperm.slane %v121, 0
  %vm123 = vcmask 31744
  %v125 = vsel %vm123, %v119, 0
  %vm127 = vcmask 1043456
  %v129 = vsel %vm127, %v120, 0
  %131 = vmatpush.msra.mxu0 0.0
  %132 = vmatpush.msra.mxu0 0.0
  %133 = vmatpush.msra.mxu0 0.0
  %134 = vmatpush.msra.mxu0 0.0
  %135 = vmatpush.msra.mxu0 0.0
  %136 = vmatpush.msra.mxu0 0.0
  %137 = vmatpush.msra.mxu0 0.0
  %138 = vmatpush.msra.mxu0 0.0
  %139 = vmatpush.msra.mxu0 0.0
  %140 = vmatpush.msra.mxu0 0.0
  %141 = vmatpush.msra.mxu0 0.0
  %142 = vmatpush.msra.mxu0 0.0
  %143 = vmatpush.msra.mxu0 0.0
  %144 = vmatpush.msra.mxu0 0.0
  %145 = vmatpush.msra.mxu0 0.0
  %146 = vmatpush.msra.mxu0 %v129
  %147 = vmatmul.f32.gmra.mxu0 %v125
  %v148 = vpop.f32.mrf.mxu0
  %v149 = vadd.f32 %v122, %v148
  %150 = vdwg.mxu0
  %v152 = vrot.slane %v149, 4
  %154 = vxpose.xlu0.b32.start [1/16] %v149, 128
  %155 = vxpose.xlu0.b32.cont [2/16] 0.0, 128
  %156 = vxpose.xlu0.b32.cont [3/16] 0.0, 128
  %157 = vxpose.xlu0.b32.cont [4/16] 0.0, 128
  %158 = vxpose.xlu0.b32.cont [5/16] 0.0, 128
  %159 = vxpose.xlu0.b32.cont [6/16] 0.0, 128
  %160 = vxpose.xlu0.b32.cont [7/16] 0.0, 128
  %161 = vxpose.xlu0.b32.cont [8/16] 0.0, 128
  %162 = vxpose.xlu0.b32.cont [9/16] 0.0, 128
  %163 = vxpose.xlu0.b32.cont [10/16] 0.0, 128
  %164 = vxpose.xlu0.b32.cont [11/16] 0.0, 128
  %165 = vxpose.xlu0.b32.cont [12/16] 0.0, 128
  %166 = vxpose.xlu0.b32.cont [13/16] 0.0, 128
  %167 = vxpose.xlu0.b32.cont [14/16] 0.0, 128
  %168 = vxpose.xlu0.b32.cont [15/16] 0.0, 128
  %169 = vxpose.xlu0.b32.end [16/16] 0.0, 128
  %v170 = vpop.trf.xlu0
  %v171 = vpop.trf.xlu0
  %v172 = vpop.trf.xlu0
  %v173 = vpop.trf.xlu0
  %v174 = vpop.trf.xlu0
  %v175 = vpop.trf.xlu0
  %v176 = vpop.trf.xlu0
  %v177 = vpop.trf.xlu0
  %v178 = vpop.trf.xlu0
  %v179 = vpop.trf.xlu0
  %v180 = vpop.trf.xlu0
  %v181 = vpop.trf.xlu0
  %v182 = vpop.trf.xlu0
  %v183 = vpop.trf.xlu0
  %v184 = vpop.trf.xlu0
  %v185 = vpop.trf.xlu0
  %186 = vxpose.xlu0.b32.start [1/16] %v152, 128
  %187 = vxpose.xlu0.b32.cont [2/16] 0.0, 128
  %188 = vxpose.xlu0.b32.cont [3/16] 0.0, 128
  %189 = vxpose.xlu0.b32.cont [4/16] 0.0, 128
  %190 = vxpose.xlu0.b32.cont [5/16] 0.0, 128
  %191 = vxpose.xlu0.b32.cont [6/16] 0.0, 128
  %192 = vxpose.xlu0.b32.cont [7/16] 0.0, 128
  %193 = vxpose.xlu0.b32.cont [8/16] 0.0, 128
  %194 = vxpose.xlu0.b32.cont [9/16] 0.0, 128
  %195 = vxpose.xlu0.b32.cont [10/16] 0.0, 128
  %196 = vxpose.xlu0.b32.cont [11/16] 0.0, 128
  %197 = vxpose.xlu0.b32.cont [12/16] 0.0, 128
  %198 = vxpose.xlu0.b32.cont [13/16] 0.0, 128
  %199 = vxpose.xlu0.b32.cont [14/16] 0.0, 128
  %200 = vxpose.xlu0.b32.cont [15/16] 0.0, 128
  %201 = vxpose.xlu0.b32.end [16/16] 0.0, 128
  %v202 = vpop.trf.xlu0
  %v203 = vpop.trf.xlu0
  %v204 = vpop.trf.xlu0
  %v205 = vpop.trf.xlu0
  %v206 = vpop.trf.xlu0
  %v207 = vpop.trf.xlu0
  %v208 = vpop.trf.xlu0
  %v209 = vpop.trf.xlu0
  %v210 = vpop.trf.xlu0
  %v211 = vpop.trf.xlu0
  %v212 = vpop.trf.xlu0
  %v213 = vpop.trf.xlu0
  %v214 = vpop.trf.xlu0
  %v215 = vpop.trf.xlu0
  %v216 = vpop.trf.xlu0
  %v217 = vpop.trf.xlu0
  %220 = vrot.lane.b32.xlu0 %v170, 4
  %v221 = vpop.permute.xlu0 %220
  %222 = vrot.lane.b32.xlu0 %v202, 4
  %v223 = vpop.permute.xlu0 %222
  %v226 = vsel %vm123, %v71, %v221
  %v227 = vsel %vm123, %v103, %v223
  %v228 = vld [vmem:[%s3 + $0x4] sm:$0xff]
  %v229 = vld [vmem:[%s3 + $0xc] sm:$0xff]
  %v230 = vld [vmem:[%s3 + $0x14] sm:$0xff]
  %v231 = vld [vmem:[%s3 + $0xd5] sm:$0x1]
  %v232 = vld [vmem:[%s3 + $0xd6] sm:$0x1]
  %v233 = vld [vmem:[%s3 + $0xd7] sm:$0x1]
  %v234 = vld [vmem:[%s3 + $0x1c] sm:$0xff]
  %v235 = vld [vmem:[%s3 + $0x24] sm:$0xff]
  %v236 = vld [vmem:[%s3 + $0x2c] sm:$0xff]
  %v237 = vld [vmem:[%s3 + $0x34] sm:$0xff]
  %v238 = vld [vmem:[%s3 + $0x3c] sm:$0xff]
  %v239 = vld [vmem:[%s3 + $0x44] sm:$0xff]
  %v240 = vld [vmem:[%s3 + $0xd8] sm:$0x1]
  %v241 = vld [vmem:[%s3 + $0xd9] sm:$0x1]
  %v242 = vld [vmem:[%s3 + $0xda] sm:$0x1]
  %v243 = vrot.slane %v226, 7
  %v244 = vrot.slane %v227, 7
  %vm245 = vcmp.lt.s32.totalorder %v23, 1
  %v246 = vsel %vm245, %v243, %v244
  %v247 = vsel %vm245, %v244, %v243
  %v248 = vsel %vm49, 1, 0
  %v249 = vsel %vm50, 1, 0
  %vm250 = vcmp.eq.s32.totalorder %v248, 1
  %vm251 = vcmp.eq.s32.totalorder %v249, 1
  %v252 = vsel %vm250, 0.0, %v247
  %v253 = vsel %vm251, 0.0, %v246
  %v254 = vrot.slane %v226, 1
  %v255 = vrot.slane %v227, 1
  %vm256 = vcmp.lt.s32.totalorder %v23, 7
  %v257 = vsel %vm256, %v254, %v255
  %v258 = vsel %vm256, %v255, %v254
  %v259 = vsel %vm51, 1, 0
  %v260 = vsel %vm52, 1, 0
  %vm261 = vcmp.eq.s32.totalorder %v259, 1
  %vm262 = vcmp.eq.s32.totalorder %v260, 1
  %v263 = vsel %vm261, 0.0, %v257
  %v264 = vsel %vm262, 0.0, %v258
  %267 = vrot.lane.b32.xlu0 %v226, 8
  %v268 = vpop.permute.xlu0 %267
  %269 = vrot.lane.b32.xlu0 %v227, 8
  %v270 = vpop.permute.xlu0 %269
  %275 = vrot.lane.b32.xlu0 %v263, 16
  %v276 = vpop.permute.xlu0 %275
  %277 = vrot.lane.b32.xlu0 %v264, 16
  %v278 = vpop.permute.xlu0 %277
  %vm281 = vcmask 64512
  %v282 = vsel %vm281, %v252, %v268
  %v283 = vsel %vm281, %v253, %v270
  %vm284 = vcmask 130048
  %v285 = vsel %vm284, %v282, %v276
  %v286 = vsel %vm284, %v283, %v278
  %v287 = vperm.slane %v231, 0
  %vm288 = vcmask 195584
  %v290 = vsel %vm288, %v285, 0
  %v293 = vsel %vm288, %v286, 0
  %295 = vmatpush.msra.mxu0 0.0
  %296 = vmatpush.msra.mxu0 0.0
  %297 = vmatpush.msra.mxu0 0.0
  %298 = vmatpush.msra.mxu0 0.0
  %299 = vmatpush.msra.mxu0 0.0
  %300 = vmatpush.msra.mxu0 0.0
  %301 = vmatpush.msra.mxu0 0.0
  %302 = vmatpush.msra.mxu0 0.0
  %303 = vmatpush.msra.mxu0 0.0
  %304 = vmatpush.msra.mxu0 0.0
  %305 = vmatpush.msra.mxu0 0.0
  %306 = vmatpush.msra.mxu0 0.0
  %307 = vmatpush.msra.mxu0 0.0
  %308 = vmatpush.msra.mxu0 %v230
  %309 = vmatpush.msra.mxu0 %v229
  %310 = vmatpush.msra.mxu0 %v228
  %311 = vmatmul.f32.gmra.mxu0 %v290
  %v312 = vpop.f32.mrf.mxu0
  %v313 = vadd.f32 %v287, %v312
  %314 = vmatmul.f32.gmra.mxu0 %v293
  %v315 = vpop.f32.mrf.mxu0
  %v316 = vadd.f32 %v287, %v315
  %317 = vdwg.mxu0
  %v318 = vsel %vm284, %v313, 0.0
  %v319 = vsel %vm284, %v316, 0.0
  %v320 = vadd.f32 %v318, %v319
  %v321 = vrot.slane %v320, 4
  %v322 = vadd.f32 %v320, %v321
  %v323 = vrot.slane %v322, 2
  %v324 = vadd.f32 %v322, %v323
  %v325 = vrot.slane %v324, 1
  %v326 = vadd.f32 %v324, %v325
  %v327 = vrcp.pop 16.0
  %v328 = vmul.f32 16.0, %v327
  %v329 = vsub.f32 1.0, %v328
  %v330 = vmul.f32 %v327, %v329
  %v331 = vadd.f32 %v327, %v330
  %vm332 = vweird.f32 %v327
  %v333 = vsel %vm332, %v327, %v331
  %v334 = vmul.f32 %v326, %v333
  %v335 = vsub.f32 %v313, %v334
  %v336 = vsub.f32 %v316, %v334
  %v337 = vmul.f32 %v335, %v335
  %v338 = vmul.f32 %v336, %v336
  %v339 = vsel %vm284, %v337, 0.0
  %v340 = vsel %vm284, %v338, 0.0
  %v341 = vadd.f32 %v339, %v340
  %v342 = vrot.slane %v341, 4
  %v343 = vadd.f32 %v341, %v342
  %v344 = vrot.slane %v343, 2
  %v345 = vadd.f32 %v343, %v344
  %v346 = vrot.slane %v345, 1
  %v347 = vadd.f32 %v345, %v346
  %v348 = vmul.f32 %v347, %v333
  %v349 = vadd.f32 %v348, 1e-05
  %v350 = vrsqrt.pop %v349
  %v351 = vmul.f32 %v350, %v349
  %v352 = vmul.f32 %v351, %v350
  %v353 = vmul.f32 0.5, %v352
  %v354 = vsub.f32 1.5, %v353
  %v355 = vmul.f32 %v350, %v354
  %vm356 = vweird.f32 %v349
  %vm357 = vweird.f32 %v350
  %vm358 = vmor %vm356, %vm357
  %v359 = vsel %vm358, %v350, %v355
  %v360 = vmul.f32 %v335, %v359
  %v361 = vmul.f32 %v336, %v359
  %v362 = vperm.slane %v232, 0
  %v363 = vmul.f32 %v360, %v362
  %v364 = vmul.f32 %v361, %v362
  %v365 = vperm.slane %v233, 0
  %v366 = vadd.f32 %v363, %v365
  %v367 = vadd.f32 %v364, %v365
  %vm368 = vcmp.gt.f32.partialorder %v366, 0.0
  %vm369 = vcmp.gt.f32.partialorder %v367, 0.0
  %v370 = vmul.f32 %v366, 0.01
  %v371 = vmul.f32 %v367, 0.01
  %v372 = vsel %vm368, %v366, %v370
  %v373 = vsel %vm369, %v367, %v371
  %v374 = vrot.slane %v372, 7
  %v375 = vrot.slane %v373, 7
  %v376 = vsel %vm245, %v374, %v375
  %v377 = vsel %vm245, %v375, %v374
  %v378 = vsel %vm250, -inf, %v377
  %v379 = vsel %vm251, -inf, %v376
  %v380 = vmax.f32 %v378, %v372
  %v381 = vmax.f32 %v379, %v373
  %v382 = vrot.slane %v372, 1
  %v383 = vrot.slane %v373, 1
  %v384 = vsel %vm256, %v382, %v383
  %v385 = vsel %vm256, %v383, %v382
  %v386 = vsel %vm261, -inf, %v384
  %v387 = vsel %vm262, -inf, %v385
  %v388 = vmax.f32 %v380, %v386
  %v389 = vmax.f32 %v381, %v387
  %v390 = vrot.slane %v388, 7
  %v391 = vrot.slane %v389, 7
  %v392 = vsel %vm245, %v390, %v391
  %v393 = vsel %vm245, %v391, %v390
  %v394 = vsel %vm250, 0.0, %v393
  %v395 = vsel %vm251, 0.0, %v392
  %v396 = vrot.slane %v388, 1
  %v397 = vrot.slane %v389, 1
  %v398 = vsel %vm256, %v396, %v397
  %v399 = vsel %vm256, %v397, %v396
  %v400 = vsel %vm261, 0.0, %v398
  %v401 = vsel %vm262, 0.0, %v399
  %404 = vrot.lane.b32.xlu0 %v388, 16
  %v405 = vpop.permute.xlu0 %404
  %406 = vrot.lane.b32.xlu0 %v389, 16
  %v407 = vpop.permute.xlu0 %406
  %412 = vrot.lane.b32.xlu0 %v400, 32
  %v413 = vpop.permute.xlu0 %412
  %414 = vrot.lane.b32.xlu0 %v401, 32
  %v415 = vpop.permute.xlu0 %414
  %v418 = vsel %vm284, %v394, %v405
  %v419 = vsel %vm284, %v395, %v407
  %vm420 = vcmask 261120
  %v421 = vsel %vm420, %v418, %v413
  %v422 = vsel %vm420, %v419, %v415
  %v423 = vperm.slane %v240, 0
  %vm424 = vcmask 392192
  %v426 = vsel %vm424, %v421, 0
  %v429 = vsel %vm424, %v422, 0
  %431 = vmatpush.msra.mxu0 0.0
  %432 = vmatpush.msra.mxu0 0.0
  %433 = vmatpush.msra.mxu0 0.0
  %434 = vmatpush.msra.mxu0 0.0
  %435 = vmatpush.msra.mxu0 0.0
  %436 = vmatpush.msra.mxu0 0.0
  %437 = vmatpush.msra.mxu0 0.0
  %438 = vmatpush.msra.mxu0 0.0
  %439 = vmatpush.msra.mxu0 0.0
  %440 = vmatpush.msra.mxu0 0.0
  %441 = vmatpush.msra.mxu0 %v239
  %442 = vmatpush.msra.mxu0 %v238
  %443 = vmatpush.msra.mxu0 %v237
  %444 = vmatpush.msra.mxu0 %v236
  %445 = vmatpush.msra.mxu0 %v235
  %446 = vmatpush.msra.mxu0 %v234
  %447 = vmatmul.f32.gmra.mxu0 %v426
  %v448 = vpop.f32.mrf.mxu0
  %v449 = vadd.f32 %v423, %v448
  %450 = vmatmul.f32.gmra.mxu0 %v429
  %v451 = vpop.f32.mrf.mxu0
  %v452 = vadd.f32 %v423, %v451
  %453 = vdwg.mxu0
  %v454 = vsel %vm284, %v449, 0.0
  %v455 = vsel %vm284, %v452, 0.0
  %v456 = vadd.f32 %v454, %v455
  %v457 = vrot.slane %v456, 4
  %v458 = vadd.f32 %v456, %v457
  %v459 = vrot.slane %v458, 2
  %v460 = vadd.f32 %v458, %v459
  %v461 = vrot.slane %v460, 1
  %v462 = vadd.f32 %v460, %v461
  %v463 = vmul.f32 %v462, %v333
  %v464 = vsub.f32 %v449, %v463
  %v465 = vsub.f32 %v452, %v463
  %v466 = vmul.f32 %v464, %v464
  %v467 = vmul.f32 %v465, %v465
  %v468 = vsel %vm284, %v466, 0.0
  %v469 = vsel %vm284, %v467, 0.0
  %v470 = vadd.f32 %v468, %v469
  %v471 = vrot.slane %v470, 4
  %v472 = vadd.f32 %v470, %v471
  %v473 = vrot.slane %v472, 2
  %v474 = vadd.f32 %v472, %v473
  %v475 = vrot.slane %v474, 1
  %v476 = vadd.f32 %v474, %v475
  %v477 = vmul.f32 %v476, %v333
  %v478 = vadd.f32 %v477, 1e-05
  %v479 = vrsqrt.pop %v478
  %v480 = vmul.f32 %v479, %v478
  %v481 = vmul.f32 %v480, %v479
  %v482 = vmul.f32 0.5, %v481
  %v483 = vsub.f32 1.5, %v482
  %v484 = vmul.f32 %v479, %v483
  %vm485 = vweird.f32 %v478
  %vm486 = vweird.f32 %v479
  %vm487 = vmor %vm485, %vm486
  %v488 = vsel %vm487, %v479, %v484
  %v489 = vmul.f32 %v464, %v488
  %v490 = vmul.f32 %v465, %v488
  %v491 = vperm.slane %v241, 0
  %v492 = vmul.f32 %v489, %v491
  %v493 = vmul.f32 %v490, %v491
  %v494 = vperm.slane %v242, 0
  %v495 = vadd.f32 %v492, %v494
  %v496 = vadd.f32 %v493, %v494
  %vm497 = vcmp.gt.f32.partialorder %v495, 0.0
  %vm498 = vcmp.gt.f32.partialorder %v496, 0.0
  %v499 = vmul.f32 %v495, 0.01
  %v500 = vmul.f32 %v496, 0.01
  %v501 = vsel %vm497, %v495, %v499
  %v502 = vsel %vm498, %v496, %v500
  %v503 = vrot.slane %v501, 7
  %v504 = vrot.slane %v502, 7
  %v505 = vsel %vm245, %v503, %v504
  %v506 = vsel %vm245, %v504, %v503
  %v507 = vsel %vm250, -inf, %v506
  %v508 = vsel %vm251, -inf, %v505
  %v509 = vmax.f32 %v507, %v501
  %v510 = vmax.f32 %v508, %v502
  %v511 = vrot.slane %v501, 1
  %v512 = vrot.slane %v502, 1
  %v513 = vsel %vm256, %v511, %v512
  %v514 = vsel %vm256, %v512, %v511
  %v515 = vsel %vm261, -inf, %v513
  %v516 = vsel %vm262, -inf, %v514
  %v517 = vmax.f32 %v509, %v515
  %v518 = vmax.f32 %v510, %v516
  %v519 = vld [vmem:[%s3 + $0x4c] sm:$0xff]
  %v520 = vld [vmem:[%s3 + $0x54] sm:$0xff]
  %v521 = vld [vmem:[%s3 + $0xdb] sm:$0x1]
  %v522 = vperm.slane %v521, 0
  %v524 = vsel %vm284, %v517, 0
  %v527 = vsel %vm284, %v518, 0
  %529 = vmatpush.msra.mxu0 0.0
  %530 = vmatpush.msra.mxu0 0.0
  %531 = vmatpush.msra.mxu0 0.0
  %532 = vmatpush.msra.mxu0 0.0
  %533 = vmatpush.msra.mxu0 0.0
  %534 = vmatpush.msra.mxu0 0.0
  %535 = vmatpush.msra.mxu0 0.0
  %536 = vmatpush.msra.mxu0 0.0
  %537 = vmatpush.msra.mxu0 0.0
  %538 = vmatpush.msra.mxu0 0.0
  %539 = vmatpush.msra.mxu0 0.0
  %540 = vmatpush.msra.mxu0 0.0
  %541 = vmatpush.msra.mxu0 0.0
  %542 = vmatpush.msra.mxu0 0.0
  %543 = vmatpush.msra.mxu0 %v520
  %544 = vmatpush.msra.mxu0 %v519
  %545 = vmatmul.f32.gmra.mxu0 %v524
  %v546 = vpop.f32.mrf.mxu0
  %v547 = vadd.f32 %v522, %v546
  %548 = vmatmul.f32.gmra.mxu0 %v527
  %v549 = vpop.f32.mrf.mxu0
  %v550 = vadd.f32 %v522, %v549
  %551 = vdwg.mxu0
  %v552 = vld [vmem:[%s3 + $0x5c] sm:$0xff]
  %v553 = vld [vmem:[%s3 + $0x64] sm:$0xff]
  %v554 = vld [vmem:[%s3 + $0xdc] sm:$0x1]
  %v555 = vmul.f32 %v547, %v552
  %v556 = vmul.f32 %v550, %v552
  %v557 = vsel %vm123, %v555, 0.0
  %558 = vadd.xlane.f32.xlu0 %v557
  %v559 = vpop.xlane.xlu0 %558
  %v560 = vsel %vm123, %v556, 0.0
  %561 = vadd.xlane.f32.xlu0 %v560
  %v562 = vpop.xlane.xlu0 %561
  %v563 = vrot.slane %v559, 4
  %v564 = vadd.f32 %v559, %v563
  %v565 = vrot.slane %v564, 2
  %v566 = vadd.f32 %v564, %v565
  %v567 = vrot.slane %v566, 1
  %v568 = vadd.f32 %v566, %v567
  %v569 = vrot.slane %v562, 4
  %v570 = vadd.f32 %v562, %v569
  %v571 = vrot.slane %v570, 2
  %v572 = vadd.f32 %v570, %v571
  %v573 = vrot.slane %v572, 1
  %v574 = vadd.f32 %v572, %v573
  %v575 = vadd.f32 %v568, %v554
  %v576 = vadd.f32 %v574, %v554
  %578 = vrot.lane.b32.xlu0 %v552, 4
  %v579 = vpop.permute.xlu0 %578
  %v581 = vmul.f32 %v547, %v579
  %v582 = vmul.f32 %v550, %v579
  %585 = vrot.lane.b32.xlu0 %v581, 124
  %v586 = vpop.permute.xlu0 %585
  %587 = vrot.lane.b32.xlu0 %v582, 124
  %v588 = vpop.permute.xlu0 %587
  %v591 = vsel %vm123, %v586, 0.0
  %592 = vadd.xlane.f32.xlu0 %v591
  %v593 = vpop.xlane.xlu0 %592
  %v594 = vsel %vm123, %v588, 0.0
  %595 = vadd.xlane.f32.xlu0 %v594
  %v596 = vpop.xlane.xlu0 %595
  %v597 = vrot.slane %v593, 4
  %v598 = vadd.f32 %v593, %v597
  %v599 = vrot.slane %v598, 2
  %v600 = vadd.f32 %v598, %v599
  %v601 = vrot.slane %v600, 1
  %v602 = vadd.f32 %v600, %v601
  %v603 = vrot.slane %v596, 4
  %v604 = vadd.f32 %v596, %v603
  %v605 = vrot.slane %v604, 2
  %v606 = vadd.f32 %v604, %v605
  %v607 = vrot.slane %v606, 1
  %v608 = vadd.f32 %v606, %v607
  %v609 = vadd.f32 %v602, %v554
  %v610 = vadd.f32 %v608, %v554
  %v611 = vmax.f32 %v575, %v609
  %v612 = vmax.f32 %v576, %v610
  %v613 = vsub.f32 %v575, %v611
  %v614 = vsub.f32 %v576, %v612
  %v615 = vmul.f32 %v613, 1.442695
  %v616 = vpow.pop %v615
  %v617 = vmul.f32 %v614, 1.442695
  %v618 = vpow.pop %v617
  %v619 = vsub.f32 %v609, %v611
  %v620 = vsub.f32 %v610, %v612
  %v621 = vmul.f32 %v619, 1.442695
  %v622 = vpow.pop %v621
  %v623 = vmul.f32 %v620, 1.442695
  %v624 = vpow.pop %v623
  %v625 = vadd.f32 %v616, %v622
  %v626 = vadd.f32 %v618, %v624
  %v627 = vrcp.pop %v625
  %v628 = vrcp.pop %v626
  %s630 = vtos %v616
  %v631 = vstv %s630
  %s634 = vtos %v618
  %v635 = vstv %s634
  %v637 = vmul.f32 %v631, %v547
  %v638 = vmul.f32 %v635, %v550
  %s640 = vtos %v622
  %v641 = vstv %s640
  %s644 = vtos %v624
  %v645 = vstv %s644
  %v647 = vmul.f32 %v641, %v547
  %v648 = vmul.f32 %v645, %v550
  %651 = vrot.lane.b32.xlu0 %v647, 124
  %v652 = vpop.permute.xlu0 %651
  %653 = vrot.lane.b32.xlu0 %v648, 124
  %v654 = vpop.permute.xlu0 %653
  %v657 = vadd.f32 %v637, %v652
  %v658 = vadd.f32 %v638, %v654
  %s660 = vtos %v627
  %v661 = vstv %s660
  %s664 = vtos %v628
  %v665 = vstv %s664
  %v667 = vmul.f32 %v657, %v661
  %v668 = vmul.f32 %v658, %v665
  %v669 = vtanh.pop %v667
  %v670 = vtanh.pop %v668
  %v671 = vmul.f32 %v547, %v553
  %v672 = vmul.f32 %v550, %v553
  %v673 = vsel %vm123, %v671, 0.0
  %674 = vadd.xlane.f32.xlu0 %v673
  %v675 = vpop.xlane.xlu0 %674
  %v676 = vsel %vm123, %v672, 0.0
  %677 = vadd.xlane.f32.xlu0 %v676
  %v678 = vpop.xlane.xlu0 %677
  %v679 = vrot.slane %v675, 4
  %v680 = vadd.f32 %v675, %v679
  %v681 = vrot.slane %v680, 2
  %v682 = vadd.f32 %v680, %v681
  %v683 = vrot.slane %v682, 1
  %v684 = vadd.f32 %v682, %v683
  %v685 = vrot.slane %v678, 4
  %v686 = vadd.f32 %v678, %v685
  %v687 = vrot.slane %v686, 2
  %v688 = vadd.f32 %v686, %v687
  %v689 = vrot.slane %v688, 1
  %v690 = vadd.f32 %v688, %v689
  %v691 = vadd.f32 %v684, %v554
  %v692 = vadd.f32 %v690, %v554
  %694 = vrot.lane.b32.xlu0 %v553, 4
  %v695 = vpop.permute.xlu0 %694
  %v697 = vmul.f32 %v547, %v695
  %v698 = vmul.f32 %v550, %v695
  %701 = vrot.lane.b32.xlu0 %v697, 124
  %v702 = vpop.permute.xlu0 %701
  %703 = vrot.lane.b32.xlu0 %v698, 124
  %v704 = vpop.permute.xlu0 %703
  %v707 = vsel %vm123, %v702, 0.0
  %708 = vadd.xlane.f32.xlu0 %v707
  %v709 = vpop.xlane.xlu0 %708
  %v710 = vsel %vm123, %v704, 0.0
  %711 = vadd.xlane.f32.xlu0 %v710
  %v712 = vpop.xlane.xlu0 %711
  %v713 = vrot.slane %v709, 4
  %v714 = vadd.f32 %v709, %v713
  %v715 = vrot.slane %v714, 2
  %v716 = vadd.f32 %v714, %v715
  %v717 = vrot.slane %v716, 1
  %v718 = vadd.f32 %v716, %v717
  %v719 = vrot.slane %v712, 4
  %v720 = vadd.f32 %v712, %v719
  %v721 = vrot.slane %v720, 2
  %v722 = vadd.f32 %v720, %v721
  %v723 = vrot.slane %v722, 1
  %v724 = vadd.f32 %v722, %v723
  %v725 = vadd.f32 %v718, %v554
  %v726 = vadd.f32 %v724, %v554
  %v727 = vmax.f32 %v691, %v725
  %v728 = vmax.f32 %v692, %v726
  %v729 = vsub.f32 %v691, %v727
  %v730 = vsub.f32 %v692, %v728
  %v731 = vmul.f32 %v729, 1.442695
  %v732 = vpow.pop %v731
  %v733 = vmul.f32 %v730, 1.442695
  %v734 = vpow.pop %v733
  %v735 = vsub.f32 %v725, %v727
  %v736 = vsub.f32 %v726, %v728
  %v737 = vmul.f32 %v735, 1.442695
  %v738 = vpow.pop %v737
  %v739 = vmul.f32 %v736, 1.442695
  %v740 = vpow.pop %v739
  %v741 = vadd.f32 %v732, %v738
  %v742 = vadd.f32 %v734, %v740
  %v743 = vrcp.pop %v741
  %v744 = vrcp.pop %v742
  %747 = vrot.lane.b32.xlu0 %v732, 127
  %v748 = vpop.permute.xlu0 %747
  %749 = vrot.lane.b32.xlu0 %v734, 127
  %v750 = vpop.permute.xlu0 %749
  %s751 = vtos %v748
  %v752 = vstv %s751
  %s754 = vtos %v750
  %v755 = vstv %s754
  %v757 = vmul.f32 %v752, %v547
  %v758 = vmul.f32 %v755, %v550
  %761 = vrot.lane.b32.xlu0 %v738, 127
  %v762 = vpop.permute.xlu0 %761
  %763 = vrot.lane.b32.xlu0 %v740, 127
  %v764 = vpop.permute.xlu0 %763
  %s765 = vtos %v762
  %v766 = vstv %s765
  %s768 = vtos %v764
  %v769 = vstv %s768
  %v771 = vmul.f32 %v766, %v547
  %v772 = vmul.f32 %v769, %v550
  %775 = vrot.lane.b32.xlu0 %v771, 124
  %v776 = vpop.permute.xlu0 %775
  %777 = vrot.lane.b32.xlu0 %v772, 124
  %v778 = vpop.permute.xlu0 %777
  %v781 = vadd.f32 %v757, %v776
  %v782 = vadd.f32 %v758, %v778
  %785 = vrot.lane.b32.xlu0 %v743, 127
  %v786 = vpop.permute.xlu0 %785
  %787 = vrot.lane.b32.xlu0 %v744, 127
  %v788 = vpop.permute.xlu0 %787
  %s789 = vtos %v786
  %v790 = vstv %s789
  %s792 = vtos %v788
  %v793 = vstv %s792
  %v795 = vmul.f32 %v781, %v790
  %v796 = vmul.f32 %v782, %v793
  %v797 = vtanh.pop %v795
  %v798 = vtanh.pop %v796
  %v799 = vld [vmem:[%s2] sm:$0xff]
  %v800 = vld [vmem:[%s2 + $0x8] sm:$0xff]
  %v801 = vmul.f32 %v797, 0.5
  %v802 = vmul.f32 %v798, 0.5
  %v803 = vmul.f32 %v801, 1.442695
  %v804 = vpow.pop %v803
  %v805 = vmul.f32 %v802, 1.442695
  %v806 = vpow.pop %v805
  %v807 = vmul.f32 %v799, %v804
  %v808 = vmul.f32 %v800, %v806
  %v809 = vadd.f32 %v669, %v807
  %v810 = vadd.f32 %v670, %v808
  %811 = vst.msk [vmem:[%s4] sm:$0xff] %vm123, %v669
  %812 = vst.msk [vmem:[%s4 + $0x8] sm:$0xff] %vm123, %v670
  %813 = vst.msk [vmem:[%s5] sm:$0xff] %vm123, %v797
  %814 = vst.msk [vmem:[%s5 + $0x8] sm:$0xff] %vm123, %v798
  %815 = vst.msk [vmem:[%s6] sm:$0xff] %vm123, %v809
  %816 = vst.msk [vmem:[%s6 + $0x8] sm:$0xff] %vm123, %v810
  %v819 = vrot.slane %v809, 1
  %v820 = vrot.slane %v810, 1
  %821 = vrot.lane.b32.xlu0 %v819, 4
  %v822 = vpop.permute.xlu0 %821
  %823 = vrot.lane.b32.xlu0 %v820, 4
  %v824 = vpop.permute.xlu0 %823
  %v827 = vsel %vm123, %v809, %v822
  %v828 = vsel %vm123, %v810, %v824
  %v831 = vrot.slane %v827, 1
  %v832 = vrot.slane %v828, 1
  %v835 = vrot.slane %v827, 2
  %v836 = vrot.slane %v828, 2
  %v839 = vrot.slane %v827, 3
  %v840 = vrot.slane %v828, 3
  %vm843 = vcmask 1040384
  %v844 = vsel %vm843, %v827, %v831
  %v845 = vsel %vm843, %v828, %v832
  %vm846 = vcmask 1041408
  %v847 = vsel %vm846, %v844, %v835
  %v848 = vsel %vm846, %v845, %v836
  %vm849 = vcmask 1042432
  %v850 = vsel %vm849, %v847, %v839
  %v851 = vsel %vm849, %v848, %v840
  %852 = vxpose.xlu0.b32.start [1/16] %v850, 128
  %853 = vxpose.xlu0.b32.cont [2/16] 0.0, 128
  %854 = vxpose.xlu0.b32.cont [3/16] 0.0, 128
  %855 = vxpose.xlu0.b32.cont [4/16] 0.0, 128
  %856 = vxpose.xlu0.b32.cont [5/16] 0.0, 128
  %857 = vxpose.xlu0.b32.cont [6/16] 0.0, 128
  %858 = vxpose.xlu0.b32.cont [7/16] 0.0, 128
  %859 = vxpose.xlu0.b32.cont [8/16] 0.0, 128
  %860 = vxpose.xlu0.b32.cont [9/16] 0.0, 128
  %861 = vxpose.xlu0.b32.cont [10/16] 0.0, 128
  %862 = vxpose.xlu0.b32.cont [11/16] 0.0, 128
  %863 = vxpose.xlu0.b32.cont [12/16] 0.0, 128
  %864 = vxpose.xlu0.b32.cont [13/16] 0.0, 128
  %865 = vxpose.xlu0.b32.cont [14/16] 0.0, 128
  %866 = vxpose.xlu0.b32.cont [15/16] 0.0, 128
  %867 = vxpose.xlu0.b32.end [16/16] 0.0, 128
  %v868 = vpop.trf.xlu0
  %v869 = vpop.trf.xlu0
  %v870 = vpop.trf.xlu0
  %v871 = vpop.trf.xlu0
  %v872 = vpop.trf.xlu0
  %v873 = vpop.trf.xlu0
  %v874 = vpop.trf.xlu0
  %v875 = vpop.trf.xlu0
  %v876 = vpop.trf.xlu0
  %v877 = vpop.trf.xlu0
  %v878 = vpop.trf.xlu0
  %v879 = vpop.trf.xlu0
  %v880 = vpop.trf.xlu0
  %v881 = vpop.trf.xlu0
  %v882 = vpop.trf.xlu0
  %v883 = vpop.trf.xlu0
  %884 = vxpose.xlu0.b32.start [1/16] %v851, 128
  %885 = vxpose.xlu0.b32.cont [2/16] 0.0, 128
  %886 = vxpose.xlu0.b32.cont [3/16] 0.0, 128
  %887 = vxpose.xlu0.b32.cont [4/16] 0.0, 128
  %888 = vxpose.xlu0.b32.cont [5/16] 0.0, 128
  %889 = vxpose.xlu0.b32.cont [6/16] 0.0, 128
  %890 = vxpose.xlu0.b32.cont [7/16] 0.0, 128
  %891 = vxpose.xlu0.b32.cont [8/16] 0.0, 128
  %892 = vxpose.xlu0.b32.cont [9/16] 0.0, 128
  %893 = vxpose.xlu0.b32.cont [10/16] 0.0, 128
  %894 = vxpose.xlu0.b32.cont [11/16] 0.0, 128
  %895 = vxpose.xlu0.b32.cont [12/16] 0.0, 128
  %896 = vxpose.xlu0.b32.cont [13/16] 0.0, 128
  %897 = vxpose.xlu0.b32.cont [14/16] 0.0, 128
  %898 = vxpose.xlu0.b32.cont [15/16] 0.0, 128
  %899 = vxpose.xlu0.b32.end [16/16] 0.0, 128
  %v900 = vpop.trf.xlu0
  %v901 = vpop.trf.xlu0
  %v902 = vpop.trf.xlu0
  %v903 = vpop.trf.xlu0
  %v904 = vpop.trf.xlu0
  %v905 = vpop.trf.xlu0
  %v906 = vpop.trf.xlu0
  %v907 = vpop.trf.xlu0
  %v908 = vpop.trf.xlu0
  %v909 = vpop.trf.xlu0
  %v910 = vpop.trf.xlu0
  %v911 = vpop.trf.xlu0
  %v912 = vpop.trf.xlu0
  %v913 = vpop.trf.xlu0
  %v914 = vpop.trf.xlu0
  %v915 = vpop.trf.xlu0
  %918 = vrot.lane.b32.xlu0 %v868, 4
  %v919 = vpop.permute.xlu0 %918
  %920 = vrot.lane.b32.xlu0 %v900, 4
  %v921 = vpop.permute.xlu0 %920
  %v924 = vsel %vm123, %v868, %v919
  %v925 = vsel %vm123, %v900, %v921
  %v926 = vld [vmem:[%s3 + $0x6c] sm:$0xff]
  %v927 = vld [vmem:[%s3 + $0x74] sm:$0xff]
  %v928 = vld [vmem:[%s3 + $0x7c] sm:$0xff]
  %v929 = vld [vmem:[%s3 + $0xdd] sm:$0x1]
  %v930 = vld [vmem:[%s3 + $0xde] sm:$0x1]
  %v931 = vld [vmem:[%s3 + $0xdf] sm:$0x1]
  %v932 = vld [vmem:[%s3 + $0x84] sm:$0xff]
  %v933 = vld [vmem:[%s3 + $0x8c] sm:$0xff]
  %v934 = vld [vmem:[%s3 + $0x94] sm:$0xff]
  %v935 = vld [vmem:[%s3 + $0x9c] sm:$0xff]
  %v936 = vld [vmem:[%s3 + $0xa4] sm:$0xff]
  %v937 = vld [vmem:[%s3 + $0xac] sm:$0xff]
  %v938 = vld [vmem:[%s3 + $0xe0] sm:$0x1]
  %v939 = vld [vmem:[%s3 + $0xe1] sm:$0x1]
  %v940 = vld [vmem:[%s3 + $0xe2] sm:$0x1]
  %v941 = vrot.slane %v924, 7
  %v942 = vrot.slane %v925, 7
  %v943 = vsel %vm245, %v941, %v942
  %v944 = vsel %vm245, %v942, %v941
  %v945 = vsel %vm250, 0.0, %v944
  %v946 = vsel %vm251, 0.0, %v943
  %v947 = vrot.slane %v924, 1
  %v948 = vrot.slane %v925, 1
  %v949 = vsel %vm256, %v947, %v948
  %v950 = vsel %vm256, %v948, %v947
  %v951 = vsel %vm261, 0.0, %v949
  %v952 = vsel %vm262, 0.0, %v950
  %955 = vrot.lane.b32.xlu0 %v924, 8
  %v956 = vpop.permute.xlu0 %955
  %957 = vrot.lane.b32.xlu0 %v925, 8
  %v958 = vpop.permute.xlu0 %957
  %963 = vrot.lane.b32.xlu0 %v951, 16
  %v964 = vpop.permute.xlu0 %963
  %965 = vrot.lane.b32.xlu0 %v952, 16
  %v966 = vpop.permute.xlu0 %965
  %v969 = vsel %vm281, %v945, %v956
  %v970 = vsel %vm281, %v946, %v958
  %v971 = vsel %vm284, %v969, %v964
  %v972 = vsel %vm284, %v970, %v966
  %v973 = vperm.slane %v929, 0
  %v975 = vsel %vm288, %v971, 0
  %v978 = vsel %vm288, %v972, 0
  %980 = vmatpush.msra.mxu0 0.0
  %981 = vmatpush.msra.mxu0 0.0
  %982 = vmatpush.msra.mxu0 0.0
  %983 = vmatpush.msra.mxu0 0.0
  %984 = vmatpush.msra.mxu0 0.0
  %985 = vmatpush.msra.mxu0 0.0
  %986 = vmatpush.msra.mxu0 0.0
  %987 = vmatpush.msra.mxu0 0.0
  %988 = vmatpush.msra.mxu0 0.0
  %989 = vmatpush.msra.mxu0 0.0
  %990 = vmatpush.msra.mxu0 0.0
  %991 = vmatpush.msra.mxu0 0.0
  %992 = vmatpush.msra.mxu0 0.0
  %993 = vmatpush.msra.mxu0 %v928
  %994 = vmatpush.msra.mxu0 %v927
  %995 = vmatpush.msra.mxu0 %v926
  %996 = vmatmul.f32.gmra.mxu0 %v975
  %v997 = vpop.f32.mrf.mxu0
  %v998 = vadd.f32 %v973, %v997
  %999 = vmatmul.f32.gmra.mxu0 %v978
  %v1000 = vpop.f32.mrf.mxu0
  %v1001 = vadd.f32 %v973, %v1000
  %1002 = vdwg.mxu0
  %v1003 = vsel %vm284, %v998, 0.0
  %v1004 = vsel %vm284, %v1001, 0.0
  %v1005 = vadd.f32 %v1003, %v1004
  %v1006 = vrot.slane %v1005, 4
  %v1007 = vadd.f32 %v1005, %v1006
  %v1008 = vrot.slane %v1007, 2
  %v1009 = vadd.f32 %v1007, %v1008
  %v1010 = vrot.slane %v1009, 1
  %v1011 = vadd.f32 %v1009, %v1010
  %v1012 = vmul.f32 %v1011, %v333
  %v1013 = vsub.f32 %v998, %v1012
  %v1014 = vsub.f32 %v1001, %v1012
  %v1015 = vmul.f32 %v1013, %v1013
  %v1016 = vmul.f32 %v1014, %v1014
  %v1017 = vsel %vm284, %v1015, 0.0
  %v1018 = vsel %vm284, %v1016, 0.0
  %v1019 = vadd.f32 %v1017, %v1018
  %v1020 = vrot.slane %v1019, 4
  %v1021 = vadd.f32 %v1019, %v1020
  %v1022 = vrot.slane %v1021, 2
  %v1023 = vadd.f32 %v1021, %v1022
  %v1024 = vrot.slane %v1023, 1
  %v1025 = vadd.f32 %v1023, %v1024
  %v1026 = vmul.f32 %v1025, %v333
  %v1027 = vadd.f32 %v1026, 1e-05
  %v1028 = vrsqrt.pop %v1027
  %v1029 = vmul.f32 %v1028, %v1027
  %v1030 = vmul.f32 %v1029, %v1028
  %v1031 = vmul.f32 0.5, %v1030
  %v1032 = vsub.f32 1.5, %v1031
  %v1033 = vmul.f32 %v1028, %v1032
  %vm1034 = vweird.f32 %v1027
  %vm1035 = vweird.f32 %v1028
  %vm1036 = vmor %vm1034, %vm1035
  %v1037 = vsel %vm1036, %v1028, %v1033
  %v1038 = vmul.f32 %v1013, %v1037
  %v1039 = vmul.f32 %v1014, %v1037
  %v1040 = vperm.slane %v930, 0
  %v1041 = vmul.f32 %v1038, %v1040
  %v1042 = vmul.f32 %v1039, %v1040
  %v1043 = vperm.slane %v931, 0
  %v1044 = vadd.f32 %v1041, %v1043
  %v1045 = vadd.f32 %v1042, %v1043
  %vm1046 = vcmp.gt.f32.partialorder %v1044, 0.0
  %vm1047 = vcmp.gt.f32.partialorder %v1045, 0.0
  %v1048 = vmul.f32 %v1044, 0.01
  %v1049 = vmul.f32 %v1045, 0.01
  %v1050 = vsel %vm1046, %v1044, %v1048
  %v1051 = vsel %vm1047, %v1045, %v1049
  %v1052 = vrot.slane %v1050, 7
  %v1053 = vrot.slane %v1051, 7
  %v1054 = vsel %vm245, %v1052, %v1053
  %v1055 = vsel %vm245, %v1053, %v1052
  %v1056 = vsel %vm250, -inf, %v1055
  %v1057 = vsel %vm251, -inf, %v1054
  %v1058 = vmax.f32 %v1056, %v1050
  %v1059 = vmax.f32 %v1057, %v1051
  %v1060 = vrot.slane %v1050, 1
  %v1061 = vrot.slane %v1051, 1
  %v1062 = vsel %vm256, %v1060, %v1061
  %v1063 = vsel %vm256, %v1061, %v1060
  %v1064 = vsel %vm261, -inf, %v1062
  %v1065 = vsel %vm262, -inf, %v1063
  %v1066 = vmax.f32 %v1058, %v1064
  %v1067 = vmax.f32 %v1059, %v1065
  %v1068 = vrot.slane %v1066, 7
  %v1069 = vrot.slane %v1067, 7
  %v1070 = vsel %vm245, %v1068, %v1069
  %v1071 = vsel %vm245, %v1069, %v1068
  %v1072 = vsel %vm250, 0.0, %v1071
  %v1073 = vsel %vm251, 0.0, %v1070
  %v1074 = vrot.slane %v1066, 1
  %v1075 = vrot.slane %v1067, 1
  %v1076 = vsel %vm256, %v1074, %v1075
  %v1077 = vsel %vm256, %v1075, %v1074
  %v1078 = vsel %vm261, 0.0, %v1076
  %v1079 = vsel %vm262, 0.0, %v1077
  %1082 = vrot.lane.b32.xlu0 %v1066, 16
  %v1083 = vpop.permute.xlu0 %1082
  %1084 = vrot.lane.b32.xlu0 %v1067, 16
  %v1085 = vpop.permute.xlu0 %1084
  %1090 = vrot.lane.b32.xlu0 %v1078, 32
  %v1091 = vpop.permute.xlu0 %1090
  %1092 = vrot.lane.b32.xlu0 %v1079, 32
  %v1093 = vpop.permute.xlu0 %1092
  %v1096 = vsel %vm284, %v1072, %v1083
  %v1097 = vsel %vm284, %v1073, %v1085
  %v1098 = vsel %vm420, %v1096, %v1091
  %v1099 = vsel %vm420, %v1097, %v1093
  %v1100 = vperm.slane %v938, 0
  %v1102 = vsel %vm424, %v1098, 0
  %v1105 = vsel %vm424, %v1099, 0
  %1107 = vmatpush.msra.mxu0 0.0
  %1108 = vmatpush.msra.mxu0 0.0
  %1109 = vmatpush.msra.mxu0 0.0
  %1110 = vmatpush.msra.mxu0 0.0
  %1111 = vmatpush.msra.mxu0 0.0
  %1112 = vmatpush.msra.mxu0 0.0
  %1113 = vmatpush.msra.mxu0 0.0
  %1114 = vmatpush.msra.mxu0 0.0
  %1115 = vmatpush.msra.mxu0 0.0
  %1116 = vmatpush.msra.mxu0 0.0
  %1117 = vmatpush.msra.mxu0 %v937
  %1118 = vmatpush.msra.mxu0 %v936
  %1119 = vmatpush.msra.mxu0 %v935
  %1120 = vmatpush.msra.mxu0 %v934
  %1121 = vmatpush.msra.mxu0 %v933
  %1122 = vmatpush.msra.mxu0 %v932
  %1123 = vmatmul.f32.gmra.mxu0 %v1102
  %v1124 = vpop.f32.mrf.mxu0
  %v1125 = vadd.f32 %v1100, %v1124
  %1126 = vmatmul.f32.gmra.mxu0 %v1105
  %v1127 = vpop.f32.mrf.mxu0
  %v1128 = vadd.f32 %v1100, %v1127
  %1129 = vdwg.mxu0
  %v1130 = vsel %vm284, %v1125, 0.0
  %v1131 = vsel %vm284, %v1128, 0.0
  %v1132 = vadd.f32 %v1130, %v1131
  %v1133 = vrot.slane %v1132, 4
  %v1134 = vadd.f32 %v1132, %v1133
  %v1135 = vrot.slane %v1134, 2
  %v1136 = vadd.f32 %v1134, %v1135
  %v1137 = vrot.slane %v1136, 1
  %v1138 = vadd.f32 %v1136, %v1137
  %v1139 = vmul.f32 %v1138, %v333
  %v1140 = vsub.f32 %v1125, %v1139
  %v1141 = vsub.f32 %v1128, %v1139
  %v1142 = vmul.f32 %v1140, %v1140
  %v1143 = vmul.f32 %v1141, %v1141
  %v1144 = vsel %vm284, %v1142, 0.0
  %v1145 = vsel %vm284, %v1143, 0.0
  %v1146 = vadd.f32 %v1144, %v1145
  %v1147 = vrot.slane %v1146, 4
  %v1148 = vadd.f32 %v1146, %v1147
  %v1149 = vrot.slane %v1148, 2
  %v1150 = vadd.f32 %v1148, %v1149
  %v1151 = vrot.slane %v1150, 1
  %v1152 = vadd.f32 %v1150, %v1151
  %v1153 = vmul.f32 %v1152, %v333
  %v1154 = vadd.f32 %v1153, 1e-05
  %v1155 = vrsqrt.pop %v1154
  %v1156 = vmul.f32 %v1155, %v1154
  %v1157 = vmul.f32 %v1156, %v1155
  %v1158 = vmul.f32 0.5, %v1157
  %v1159 = vsub.f32 1.5, %v1158
  %v1160 = vmul.f32 %v1155, %v1159
  %vm1161 = vweird.f32 %v1154
  %vm1162 = vweird.f32 %v1155
  %vm1163 = vmor %vm1161, %vm1162
  %v1164 = vsel %vm1163, %v1155, %v1160
  %v1165 = vmul.f32 %v1140, %v1164
  %v1166 = vmul.f32 %v1141, %v1164
  %v1167 = vperm.slane %v939, 0
  %v1168 = vmul.f32 %v1165, %v1167
  %v1169 = vmul.f32 %v1166, %v1167
  %v1170 = vperm.slane %v940, 0
  %v1171 = vadd.f32 %v1168, %v1170
  %v1172 = vadd.f32 %v1169, %v1170
  %vm1173 = vcmp.gt.f32.partialorder %v1171, 0.0
  %vm1174 = vcmp.gt.f32.partialorder %v1172, 0.0
  %v1175 = vmul.f32 %v1171, 0.01
  %v1176 = vmul.f32 %v1172, 0.01
  %v1177 = vsel %vm1173, %v1171, %v1175
  %v1178 = vsel %vm1174, %v1172, %v1176
  %v1179 = vrot.slane %v1177, 7
  %v1180 = vrot.slane %v1178, 7
  %v1181 = vsel %vm245, %v1179, %v1180
  %v1182 = vsel %vm245, %v1180, %v1179
  %v1183 = vsel %vm250, -inf, %v1182
  %v1184 = vsel %vm251, -inf, %v1181
  %v1185 = vmax.f32 %v1183, %v1177
  %v1186 = vmax.f32 %v1184, %v1178
  %v1187 = vrot.slane %v1177, 1
  %v1188 = vrot.slane %v1178, 1
  %v1189 = vsel %vm256, %v1187, %v1188
  %v1190 = vsel %vm256, %v1188, %v1187
  %v1191 = vsel %vm261, -inf, %v1189
  %v1192 = vsel %vm262, -inf, %v1190
  %v1193 = vmax.f32 %v1185, %v1191
  %v1194 = vmax.f32 %v1186, %v1192
  %1195 = vxpose.xlu0.b32.start [1/16] %v1193, 128
  %1196 = vxpose.xlu0.b32.cont [2/16] 0.0, 128
  %1197 = vxpose.xlu0.b32.cont [3/16] 0.0, 128
  %1198 = vxpose.xlu0.b32.cont [4/16] 0.0, 128
  %1199 = vxpose.xlu0.b32.cont [5/16] 0.0, 128
  %1200 = vxpose.xlu0.b32.cont [6/16] 0.0, 128
  %1201 = vxpose.xlu0.b32.cont [7/16] 0.0, 128
  %1202 = vxpose.xlu0.b32.cont [8/16] 0.0, 128
  %1203 = vxpose.xlu0.b32.cont [9/16] 0.0, 128
  %1204 = vxpose.xlu0.b32.cont [10/16] 0.0, 128
  %1205 = vxpose.xlu0.b32.cont [11/16] 0.0, 128
  %1206 = vxpose.xlu0.b32.cont [12/16] 0.0, 128
  %1207 = vxpose.xlu0.b32.cont [13/16] 0.0, 128
  %1208 = vxpose.xlu0.b32.cont [14/16] 0.0, 128
  %1209 = vxpose.xlu0.b32.cont [15/16] 0.0, 128
  %1210 = vxpose.xlu0.b32.end [16/16] 0.0, 128
  %v1211 = vpop.trf.xlu0
  %v1212 = vpop.trf.xlu0
  %v1213 = vpop.trf.xlu0
  %v1214 = vpop.trf.xlu0
  %v1215 = vpop.trf.xlu0
  %v1216 = vpop.trf.xlu0
  %v1217 = vpop.trf.xlu0
  %v1218 = vpop.trf.xlu0
  %v1219 = vpop.trf.xlu0
  %v1220 = vpop.trf.xlu0
  %v1221 = vpop.trf.xlu0
  %v1222 = vpop.trf.xlu0
  %v1223 = vpop.trf.xlu0
  %v1224 = vpop.trf.xlu0
  %v1225 = vpop.trf.xlu0
  %v1226 = vpop.trf.xlu0
  %1227 = vxpose.xlu0.b32.start [1/16] %v1194, 128
  %1228 = vxpose.xlu0.b32.cont [2/16] 0.0, 128
  %1229 = vxpose.xlu0.b32.cont [3/16] 0.0, 128
  %1230 = vxpose.xlu0.b32.cont [4/16] 0.0, 128
  %1231 = vxpose.xlu0.b32.cont [5/16] 0.0, 128
  %1232 = vxpose.xlu0.b32.cont [6/16] 0.0, 128
  %1233 = vxpose.xlu0.b32.cont [7/16] 0.0, 128
  %1234 = vxpose.xlu0.b32.cont [8/16] 0.0, 128
  %1235 = vxpose.xlu0.b32.cont [9/16] 0.0, 128
  %1236 = vxpose.xlu0.b32.cont [10/16] 0.0, 128
  %1237 = vxpose.xlu0.b32.cont [11/16] 0.0, 128
  %1238 = vxpose.xlu0.b32.cont [12/16] 0.0, 128
  %1239 = vxpose.xlu0.b32.cont [13/16] 0.0, 128
  %1240 = vxpose.xlu0.b32.cont [14/16] 0.0, 128
  %1241 = vxpose.xlu0.b32.cont [15/16] 0.0, 128
  %1242 = vxpose.xlu0.b32.end [16/16] 0.0, 128
  %v1243 = vpop.trf.xlu0
  %v1244 = vpop.trf.xlu0
  %v1245 = vpop.trf.xlu0
  %v1246 = vpop.trf.xlu0
  %v1247 = vpop.trf.xlu0
  %v1248 = vpop.trf.xlu0
  %v1249 = vpop.trf.xlu0
  %v1250 = vpop.trf.xlu0
  %v1251 = vpop.trf.xlu0
  %v1252 = vpop.trf.xlu0
  %v1253 = vpop.trf.xlu0
  %v1254 = vpop.trf.xlu0
  %v1255 = vpop.trf.xlu0
  %v1256 = vpop.trf.xlu0
  %v1257 = vpop.trf.xlu0
  %v1258 = vpop.trf.xlu0
  %v1261 = vrot.slane %v1211, 1
  %v1262 = vrot.slane %v1243, 1
  %1263 = vrot.lane.b32.xlu0 %v1261, 8
  %v1264 = vpop.permute.xlu0 %1263
  %1265 = vrot.lane.b32.xlu0 %v1262, 8
  %v1266 = vpop.permute.xlu0 %1265
  %v1269 = vsel %vm281, %v1211, %v1264
  %v1270 = vsel %vm281, %v1243, %v1266
  %v1273 = vrot.slane %v1212, 1
  %v1274 = vrot.slane %v1244, 1
  %1275 = vrot.lane.b32.xlu0 %v1273, 8
  %v1276 = vpop.permute.xlu0 %1275
  %1277 = vrot.lane.b32.xlu0 %v1274, 8
  %v1278 = vpop.permute.xlu0 %1277
  %v1281 = vsel %vm281, %v1212, %v1276
  %v1282 = vsel %vm281, %v1244, %v1278
  %v1285 = vrot.slane %v1269, 1
  %v1286 = vrot.slane %v1270, 1
  %v1289 = vrot.slane %v1269, 2
  %v1290 = vrot.slane %v1270, 2
  %v1293 = vrot.slane %v1269, 3
  %v1294 = vrot.slane %v1270, 3
  %v1297 = vsel %vm843, %v1269, %v1285
  %v1298 = vsel %vm843, %v1270, %v1286
  %v1299 = vsel %vm846, %v1297, %v1289
  %v1300 = vsel %vm846, %v1298, %v1290
  %v1301 = vsel %vm849, %v1299, %v1293
  %v1302 = vsel %vm849, %v1300, %v1294
  %v1305 = vrot.slane %v1281, 1
  %v1306 = vrot.slane %v1282, 1
  %v1309 = vrot.slane %v1281, 2
  %v1310 = vrot.slane %v1282, 2
  %v1313 = vrot.slane %v1281, 3
  %v1314 = vrot.slane %v1282, 3
  %v1317 = vsel %vm843, %v1281, %v1305
  %v1318 = vsel %vm843, %v1282, %v1306
  %v1319 = vsel %vm846, %v1317, %v1309
  %v1320 = vsel %vm846, %v1318, %v1310
  %v1321 = vsel %vm849, %v1319, %v1313
  %v1322 = vsel %vm849, %v1320, %v1314
  %1325 = vrot.lane.b32.xlu0 %v1321, 16
  %v1326 = vpop.permute.xlu0 %1325
  %1327 = vrot.lane.b32.xlu0 %v1322, 16
  %v1328 = vpop.permute.xlu0 %1327
  %v1331 = vsel %vm284, %v1301, %v1326
  %v1332 = vsel %vm284, %v1302, %v1328
  %v1333 = vld [vmem:[%s3 + $0xb4] sm:$0xff]
  %v1334 = vld [vmem:[%s3 + $0xbc] sm:$0xff]
  %v1335 = vld [vmem:[%s3 + $0xc4] sm:$0xff]
  %v1336 = vld [vmem:[%s3 + $0xcc] sm:$0xff]
  %v1337 = vld [vmem:[%s3 + $0xe3] sm:$0x1]
  %v1338 = vperm.slane %v1337, 0
  %1341 = vst [vmem:[#allocation1] ss:$2 sm:$0xff] %v1331
  %s1342 = scalar_lea.vmem [#allocation1], 1
  %1343 = vst [vmem:[%s1342] ss:$2 sm:$0xff] %v1332
  %v1344 = vld.sshfl [vmem:[#allocation1] sm:$0xff pattern:$0x75316420]
  %v1345 = vsel %vm420, %v1344, 0
  %1347 = vmatpush.msra.mxu0 0.0
  %1348 = vmatpush.msra.mxu0 0.0
  %1349 = vmatpush.msra.mxu0 0.0
  %1350 = vmatpush.msra.mxu0 0.0
  %1351 = vmatpush.msra.mxu0 0.0
  %1352 = vmatpush.msra.mxu0 0.0
  %1353 = vmatpush.msra.mxu0 0.0
  %1354 = vmatpush.msra.mxu0 0.0
  %1355 = vmatpush.msra.mxu0 0.0
  %1356 = vmatpush.msra.mxu0 0.0
  %1357 = vmatpush.msra.mxu0 0.0
  %1358 = vmatpush.msra.mxu0 0.0
  %1359 = vmatpush.msra.mxu0 %v1336
  %1360 = vmatpush.msra.mxu0 %v1335
  %1361 = vmatpush.msra.mxu0 %v1334
  %1362 = vmatpush.msra.mxu0 %v1333
  %1363 = vmatmul.f32.gmra.mxu0 %v1345
  %v1364 = vpop.f32.mrf.mxu0
  %v1365 = vadd.f32 %v1338, %v1364
  %1366 = vdwg.mxu0
  %1367 = vst.msk [vmem:[%s7] sm:$0xff] %vm281, %v1365
  %1369 = vrot.lane.b32.xlu0 %v1365, 120
  %v1370 = vpop.permute.xlu0 %1369
  %1372 = vst.msk [vmem:[%s8] sm:$0xff] %vm123, %v1370
  // Predicated region
  $region18: #{joint_vae_forward.1} parent=0 // pred_check
    _
  $region19: #{joint_vae_forward.1} parent=0 // pred_check_branch
    %1374 = sbr.rel (0) target = $region21
  $region20: #{joint_vae_forward.1} parent=0 // pred_region
    _
  $region21: #{joint_vae_forward.1} parent=0 // pred_fallthru
    _
  // Predicated region
  $region22: #{joint_vae_forward.1} parent=0 // pred_check
    _
  $region23: #{joint_vae_forward.1} parent=0 // pred_check_branch
    %1376 = sbr.rel (0) target = $region25
  $region24: #{joint_vae_forward.1} parent=0 // pred_region
    _
  $region25: #{joint_vae_forward.1} parent=0 // pred_fallthru
    _
  // Predicated region
  $region26: #{joint_vae_forward.1} parent=0 // pred_check
    _
  $region27: #{joint_vae_forward.1} parent=0 // pred_check_branch
    %1378 = sbr.rel (0) target = $region29
  $region28: #{joint_vae_forward.1} parent=0 // pred_region
    _
  $region29: #{joint_vae_forward.1} parent=0 // pred_fallthru
    _
  // Predicated region
  $region30: #{joint_vae_forward.1} parent=0 // pred_check
    _
  $region31: #{joint_vae_forward.1} parent=0 // pred_check_branch
    %1380 = sbr.rel (0) target = $region33
  $region32: #{joint_vae_forward.1} parent=0 // pred_region
    _
  $region33: #{joint_vae_forward.1} parent=0 // pred_fallthru
    _
  // Predicated region
  $region34: #{joint_vae_forward.1} parent=0 // pred_check
    _
  $region35: #{joint_vae_forward.1} parent=0 // pred_check_branch
    %1382 = sbr.rel (0) target = $region37
  $region36: #{joint_vae_forward.1} parent=0 // pred_region
    _
  $region37: #{joint_vae_forward.1} parent=0 // pred_fallthru
    _
  // Predicated region
  $region38: #{joint_vae_forward.1} parent=0 // pred_check
    _
  $region39: #{joint_vae_forward.1} parent=0 // pred_check_branch
    %1384 = sbr.rel (0) target = $region41
  $region40: #{joint_vae_forward.1} parent=0 // pred_region
    _
  $region41: #{joint_vae_forward.1} parent=0 // pred_fallthru
    _
  // Predicated region
  $region42: #{joint_vae_forward.1} parent=0 // pred_check
    _
  $region43: #{joint_vae_forward.1} parent=0 // pred_check_branch
    %1386 = sbr.rel (0) target = $region45
  $region44: #{joint_vae_forward.1} parent=0 // pred_region
    _
  $region45: #{joint_vae_forward.1} parent=0 // pred_fallthru
    _
  // Predicated region
  $region46: #{joint_vae_forward.1} parent=0 // pred_check
    _
  $region47: #{joint_vae_forward.1} parent=0 // pred_check_branch
    %1388 = sbr.rel (0) target = $region49
  $region48: #{joint_vae_forward.1} parent=0 // pred_region
    _
  $region49: #{joint_vae_forward.1} parent=0 // pred_fallthru
    _
  // Predicated region
  $region50: #{joint_vae_forward.1} parent=0 // pred_check
    _
  $region51: #{joint_vae_forward.1} parent=0 // pred_check_branch
    %1390 = sbr.rel (0) target = $region53
  $region52: #{joint_vae_forward.1} parent=0 // pred_region
    _
  $region53: #{joint_vae_forward.1} parent=0 // pred_fallthru
    _
  // Predicated region
  $region54: #{joint_vae_forward.1} parent=0 // pred_check
    _
  $region55: #{joint_vae_forward.1} parent=0 // pred_check_branch
    %1392 = sbr.rel (0) target = $region57
  $region56: #{joint_vae_forward.1} parent=0 // pred_region
    _
  $region57: #{joint_vae_forward.1} parent=0 // pred_fallthru
    _

</llo_original>
